<compile_context>
chip_gen: v7x
topology: tpu7x:2x2x1
jax: 0.10.0
libtpu: 0.0.40
codegen_flags: <defaults>
</compile_context>

<pallas_src>
import functools

import jax
import jax.numpy as jnp
from jax.experimental import pallas as pl
from jax.experimental.pallas import tpu as pltpu


def _round_up(x, m):
    return ((x + m - 1) // m) * m


def _conv_tile(w, xc, xn, tap_offsets, cin, cout, tl):
    """Fused-im2col 3x3 conv for one lane tile, lane-dense [Cout, TL] output.

    w  : [Cout, KH*KW*Cin] f32 weights (tap-major, cin-minor).
    xc : [Cin, TL]   current lane tile of the flattened, zero-padded input.
    xn : [Cin, HALO] leading lanes of the next tile (halo for shifted taps).
    """
    xw = jnp.concatenate([xc, xn], axis=1)          # [Cin, TL + HALO]
    acc = jnp.zeros((cout, tl), jnp.float32)
    k = 0
    for off in tap_offsets:                         # 9 taps: constant lane shifts
        x_tap = xw[:, off:off + tl]                 # [Cin, TL]
        for ci in range(cin):                       # VPU broadcast MACs
            acc = acc + w[:, k:k + 1] * x_tap[ci:ci + 1, :]
            k += 1
    return acc


def _stats_kernel(w_ref, xc_ref, xn_ref, m_ref, sum_ref, ssq_ref, *,
                  tap_offsets, cin, cout, tl):
    """Pass 1: masked per-channel sum / sum-of-squares of the conv output."""
    @pl.when(pl.program_id(0) == 0)
    def _():
        sum_ref[...] = jnp.zeros_like(sum_ref)
        ssq_ref[...] = jnp.zeros_like(ssq_ref)

    conv = _conv_tile(w_ref[...], xc_ref[...], xn_ref[...],
                      tap_offsets, cin, cout, tl)           # [Cout, TL]
    cm = conv * m_ref[...]                                  # mask invalid anchors
    sum_ref[...] += jnp.sum(cm, axis=1, keepdims=True)
    ssq_ref[...] += jnp.sum(cm * conv, axis=1, keepdims=True)


def _apply_kernel(w_ref, xc_ref, xn_ref, scale_ref, shift_ref, o_ref, *,
                  tap_offsets, cin, cout, tl, negative_slope):
    """Pass 2: conv (recomputed) + folded BN affine + LeakyReLU."""
    conv = _conv_tile(w_ref[...], xc_ref[...], xn_ref[...],
                      tap_offsets, cin, cout, tl)           # [Cout, TL]
    y = conv * scale_ref[...] + shift_ref[...]
    o_ref[...] = jnp.where(y >= 0, y, negative_slope * y)


def conv_block1_forward(x_nchw, weight, bias, gamma, beta,
                        strides=1, pads=1, dilas=1, eps=1e-5,
                        negative_slope=0.3, tile_lanes=512):
    """Forward pass of conv_block1.

    x_nchw : [N, Cin, H, W] float32
    weight : [Cout, Cin, 3, 3] (PyTorch Conv2d layout)
    bias   : [Cout]   (unused: BatchNorm mean-subtraction cancels it exactly)
    gamma, beta : [Cout] BatchNorm2d affine params
    Returns [N, Cout, OH, OW].
    """
    del bias  # exactly cancelled by BN's per-channel mean subtraction
    N, Cin, H, W = x_nchw.shape
    Cout, _, KH, KW = weight.shape
    assert tile_lanes % 128 == 0

    Hp, Wp = H + 2 * pads, W + 2 * pads
    OH = (H + 2 * pads - dilas * (KH - 1) - 1) // strides + 1
    OW = (W + 2 * pads - dilas * (KW - 1) - 1) // strides + 1

    # per-tap lane offsets in the flattened (n, hp, wp) padded coordinates
    tap_offsets = tuple(kh * dilas * Wp + kw * dilas
                        for kh in range(KH) for kw in range(KW))
    max_shift = tap_offsets[-1]

    TL = tile_lanes
    # halo block: just enough 128-lane groups of the next tile to cover the
    # largest tap shift (falls back to a full tile if it would not divide TL)
    halo = _round_up(max(max_shift, 1), 128)
    if TL % halo != 0:
        halo = TL
    assert max_shift <= halo, "halo must fit in one neighbor tile"

    L = N * Hp * Wp
    num_tiles = pl.cdiv(L, TL)
    L_anchor = num_tiles * TL

    # --- glue: channels-first flatten of the zero-padded input ---
    x_cf = jnp.transpose(x_nchw, (1, 0, 2, 3)).astype(jnp.float32)   # [Cin,N,H,W]
    x_pad = jnp.pad(x_cf, ((0, 0), (0, 0), (pads, pads), (pads, pads)))
    x_flat = x_pad.reshape(Cin, L)
    # pad lanes so the halo block of the last tile always exists (and both
    # block widths divide the padded lane count)
    x_flat = jnp.pad(x_flat, ((0, 0), (0, (num_tiles + 1) * TL - L)))

    # weights [Cout, Cin, KH, KW] -> [Cout, KH*KW*Cin], tap-major / cin-minor
    K = KH * KW * Cin
    w_mat = jnp.transpose(weight, (0, 2, 3, 1)).reshape(Cout, K).astype(jnp.float32)

    # validity mask over flattened padded anchor positions (exact BN stats even
    # with tile padding / invalid border anchors)
    pos = jnp.arange(L_anchor, dtype=jnp.int32)
    n_idx = pos // (Hp * Wp)
    rem = pos % (Hp * Wp)
    hp = rem // Wp
    wp = rem % Wp
    valid = ((n_idx < N)
             & (hp % strides == 0) & (hp < OH * strides)
             & (wp % strides == 0) & (wp < OW * strides))
    mask = valid.astype(jnp.float32).reshape(1, L_anchor)

    grid = (num_tiles,)
    blocks_per_tile = TL // halo
    w_spec = pl.BlockSpec((Cout, K), lambda i: (0, 0))
    xc_spec = pl.BlockSpec((Cin, TL), lambda i: (0, i))
    xn_spec = pl.BlockSpec((Cin, halo),
                           lambda i: (0, (i + 1) * blocks_per_tile))  # halo only
    # NOTE: VMEM per step ~ O(Cin*(TL+halo) + Cout*TL) f32 (double-buffered) --
    # a few hundred KiB at TL=512, safely under scoped VMEM on v5e/v6e/v7x.

    # ---- pass 1: per-channel sum / sum-of-squares (reduction grid axis) ----
    stats_kernel = functools.partial(_stats_kernel, tap_offsets=tap_offsets,
                                     cin=Cin, cout=Cout, tl=TL)
    conv_sum, conv_ssq = pl.pallas_call(
        stats_kernel,
        out_shape=(jax.ShapeDtypeStruct((Cout, 1), jnp.float32),
                   jax.ShapeDtypeStruct((Cout, 1), jnp.float32)),
        grid=grid,
        in_specs=[w_spec, xc_spec, xn_spec,
                  pl.BlockSpec((1, TL), lambda i: (0, i))],
        out_specs=(pl.BlockSpec((Cout, 1), lambda i: (0, 0)),
                   pl.BlockSpec((Cout, 1), lambda i: (0, 0))),
        compiler_params=pltpu.CompilerParams(
            dimension_semantics=("arbitrary",)),
    )(w_mat, x_flat, x_flat, mask)

    # ---- tiny per-channel BN fold (8 scalars; plain JAX glue) ----
    M = N * OH * OW
    mean = conv_sum / M
    var = jnp.maximum(conv_ssq / M - mean * mean, 0.0)    # biased (training mode)
    inv_std = jax.lax.rsqrt(var + eps)
    scale = gamma.reshape(Cout, 1).astype(jnp.float32) * inv_std
    shift = beta.reshape(Cout, 1).astype(jnp.float32) - mean * scale

    # ---- pass 2: conv + BN affine + LeakyReLU, lane-dense [Cout, M] output ----
    apply_kernel = functools.partial(_apply_kernel, tap_offsets=tap_offsets,
                                     cin=Cin, cout=Cout, tl=TL,
                                     negative_slope=negative_slope)
    y_full = pl.pallas_call(
        apply_kernel,
        out_shape=jax.ShapeDtypeStruct((Cout, L_anchor), jnp.float32),
        grid=grid,
        in_specs=[w_spec, xc_spec, xn_spec,
                  pl.BlockSpec((Cout, 1), lambda i: (0, 0)),
                  pl.BlockSpec((Cout, 1), lambda i: (0, 0))],
        out_specs=pl.BlockSpec((Cout, TL), lambda i: (0, i)),
        compiler_params=pltpu.CompilerParams(
            dimension_semantics=("parallel",)),   # shards tiles across v7x's 2 TCs
    )(w_mat, x_flat, x_flat, scale, shift)

    # ---- glue: keep valid anchors, back to NCHW (major-axis swap only) ----
    y = y_full[:, :L].reshape(Cout, N, Hp, Wp)
    y = y[:, :, 0:(OH - 1) * strides + 1:strides, 0:(OW - 1) * strides + 1:strides]
    return jnp.transpose(y, (1, 0, 2, 3))


if __name__ == "__main__":
    # conv_block1(in_ch=4, out_ch=8, strides=1, pads=1, dilas=1)
    N, Cin, H, W = 2, 4, 16, 16
    Cout, KH, KW = 8, 3, 3

    key = jax.random.PRNGKey(0)
    kx, kw, kb = jax.random.split(key, 3)

    x = jax.random.normal(kx, (N, Cin, H, W), dtype=jnp.float32)

    fan_in = Cin * KH * KW
    bound = 1.0 / (fan_in ** 0.5)
    conv_w = jax.random.uniform(kw, (Cout, Cin, KH, KW), jnp.float32,
                                minval=-bound, maxval=bound)
    conv_b = jax.random.uniform(kb, (Cout,), jnp.float32,
                                minval=-bound, maxval=bound)
    bn_gamma = jnp.ones((Cout,), jnp.float32)
    bn_beta = jnp.zeros((Cout,), jnp.float32)

    y = conv_block1_forward(x, conv_w, conv_b, bn_gamma, bn_beta,
                            strides=1, pads=1, dilas=1)
    y = jax.block_until_ready(y)
    assert y.shape == (N, Cout, H, W), y.shape

    # pure-JAX reference: Conv2d(+bias) -> BatchNorm2d(training stats) -> LeakyReLU(0.3)
    ref_conv = jax.lax.conv_general_dilated(
        x, conv_w, window_strides=(1, 1), padding=((1, 1), (1, 1)),
        rhs_dilation=(1, 1), dimension_numbers=("NCHW", "OIHW", "NCHW"))
    ref_conv = ref_conv + conv_b.reshape(1, Cout, 1, 1)
    mu = jnp.mean(ref_conv, axis=(0, 2, 3), keepdims=True)
    va = jnp.mean((ref_conv - mu) ** 2, axis=(0, 2, 3), keepdims=True)
    ref = ((ref_conv - mu) * jax.lax.rsqrt(va + 1e-5)
           * bn_gamma.reshape(1, Cout, 1, 1) + bn_beta.reshape(1, Cout, 1, 1))
    ref = jnp.where(ref >= 0, ref, 0.3 * ref)
    assert jnp.allclose(y, ref, atol=2e-4, rtol=2e-4), \
        float(jnp.max(jnp.abs(y - ref)))
    print("KERNEL_OK")
</pallas_src>

<mosaic_0001>
module attributes {stable_mosaic.version = 11 : i64} {
  func.func @_stats_kernel(%arg0: i32, %arg1: memref<8x36xf32, #tpu.memory_space<vmem>>, %arg2: memref<4x512xf32, #tpu.memory_space<vmem>>, %arg3: memref<4x128xf32, #tpu.memory_space<vmem>>, %arg4: memref<1x512xf32, #tpu.memory_space<vmem>>, %arg5: memref<8x1xf32, #tpu.memory_space<vmem>>, %arg6: memref<8x1xf32, #tpu.memory_space<vmem>>) attributes {dimension_semantics = [#tpu.dimension_semantics<arbitrary>], iteration_bounds = array<i64: 2>, scalar_prefetch = 0 : i64, scratch_operands = 0 : i64, tpu.core_type = #tpu.core_type<tc>, window_params = [{pipeline_mode = #tpu.pipeline_mode<synchronous>, transform_indices = @transform_0, window_bounds = array<i64: 8, 36>}, {transform_indices = @transform_1, window_bounds = array<i64: 4, 512>}, {transform_indices = @transform_2, window_bounds = array<i64: 4, 128>}, {transform_indices = @transform_3, window_bounds = array<i64: 1, 512>}, {pipeline_mode = #tpu.pipeline_mode<synchronous>, transform_indices = @transform_4, window_bounds = array<i64: 8, 1>}, {pipeline_mode = #tpu.pipeline_mode<synchronous>, transform_indices = @transform_5, window_bounds = array<i64: 8, 1>}]} {
    %c0_i32 = arith.constant 0 : i32
    %0 = arith.cmpi eq, %arg0, %c0_i32 : i32
    %1 = arith.extui %0 : i1 to i32
    %c0_i32_0 = arith.constant 0 : i32
    %2 = arith.cmpi ne, %1, %c0_i32_0 : i32
    scf.if %2 {
      %cst_18 = arith.constant 0.000000e+00 : f32
      %247 = vector.broadcast %cst_18 : f32 to vector<8x1xf32>
      %c0_19 = arith.constant 0 : index
      %c0_20 = arith.constant 0 : index
      %248 = vector.load %arg5[%c0_19, %c0_20] : memref<8x1xf32, #tpu.memory_space<vmem>>, vector<8x1xf32>
      tpu.vector_store %arg5[%c0_19, %c0_20], %247 {strides = array<i32>} : memref<8x1xf32, #tpu.memory_space<vmem>>, vector<8x1xf32>,
      %cst_21 = arith.constant 0.000000e+00 : f32
      %249 = vector.broadcast %cst_21 : f32 to vector<8x1xf32>
      %c0_22 = arith.constant 0 : index
      %c0_23 = arith.constant 0 : index
      %250 = vector.load %arg6[%c0_22, %c0_23] : memref<8x1xf32, #tpu.memory_space<vmem>>, vector<8x1xf32>
      tpu.vector_store %arg6[%c0_22, %c0_23], %249 {strides = array<i32>} : memref<8x1xf32, #tpu.memory_space<vmem>>, vector<8x1xf32>,
    } else {
    }
    %c0 = arith.constant 0 : index
    %c0_1 = arith.constant 0 : index
    %3 = vector.load %arg1[%c0, %c0_1] : memref<8x36xf32, #tpu.memory_space<vmem>>, vector<8x36xf32>
    %c0_2 = arith.constant 0 : index
    %c0_3 = arith.constant 0 : index
    %4 = vector.load %arg2[%c0_2, %c0_3] : memref<4x512xf32, #tpu.memory_space<vmem>>, vector<4x512xf32>
    %c0_4 = arith.constant 0 : index
    %c0_5 = arith.constant 0 : index
    %5 = vector.load %arg3[%c0_4, %c0_5] : memref<4x128xf32, #tpu.memory_space<vmem>>, vector<4x128xf32>
    %6 = tpu.concatenate %4, %5 in 1 : vector<4x512xf32>, vector<4x128xf32> -> vector<4x640xf32>
    %cst = arith.constant 0.000000e+00 : f32
    %7 = vector.broadcast %cst : f32 to vector<8x512xf32>
    %8 = vector.extract_strided_slice %6 {offsets = [0, 0], sizes = [4, 512], strides = [1, 1]} : vector<4x640xf32> to vector<4x512xf32>
    %9 = vector.extract_strided_slice %3 {offsets = [0, 0], sizes = [8, 1], strides = [1, 1]} : vector<8x36xf32> to vector<8x1xf32>
    %10 = vector.extract_strided_slice %8 {offsets = [0, 0], sizes = [1, 512], strides = [1, 1]} : vector<4x512xf32> to vector<1x512xf32>
    %11 = vector.broadcast %9 : vector<8x1xf32> to vector<8x512xf32>
    %12 = vector.broadcast %10 : vector<1x512xf32> to vector<8x512xf32>
    %13 = arith.mulf %11, %12 : vector<8x512xf32>
    %14 = arith.addf %7, %13 : vector<8x512xf32>
    %15 = vector.extract_strided_slice %3 {offsets = [0, 1], sizes = [8, 1], strides = [1, 1]} : vector<8x36xf32> to vector<8x1xf32>
    %16 = vector.extract_strided_slice %8 {offsets = [1, 0], sizes = [1, 512], strides = [1, 1]} : vector<4x512xf32> to vector<1x512xf32>
    %17 = vector.broadcast %15 : vector<8x1xf32> to vector<8x512xf32>
    %18 = vector.broadcast %16 : vector<1x512xf32> to vector<8x512xf32>
    %19 = arith.mulf %17, %18 : vector<8x512xf32>
    %20 = arith.addf %14, %19 : vector<8x512xf32>
    %21 = vector.extract_strided_slice %3 {offsets = [0, 2], sizes = [8, 1], strides = [1, 1]} : vector<8x36xf32> to vector<8x1xf32>
    %22 = vector.extract_strided_slice %8 {offsets = [2, 0], sizes = [1, 512], strides = [1, 1]} : vector<4x512xf32> to vector<1x512xf32>
    %23 = vector.broadcast %21 : vector<8x1xf32> to vector<8x512xf32>
    %24 = vector.broadcast %22 : vector<1x512xf32> to vector<8x512xf32>
    %25 = arith.mulf %23, %24 : vector<8x512xf32>
    %26 = arith.addf %20, %25 : vector<8x512xf32>
    %27 = vector.extract_strided_slice %3 {offsets = [0, 3], sizes = [8, 1], strides = [1, 1]} : vector<8x36xf32> to vector<8x1xf32>
    %28 = vector.extract_strided_slice %8 {offsets = [3, 0], sizes = [1, 512], strides = [1, 1]} : vector<4x512xf32> to vector<1x512xf32>
    %29 = vector.broadcast %27 : vector<8x1xf32> to vector<8x512xf32>
    %30 = vector.broadcast %28 : vector<1x512xf32> to vector<8x512xf32>
    %31 = arith.mulf %29, %30 : vector<8x512xf32>
    %32 = arith.addf %26, %31 : vector<8x512xf32>
    %33 = vector.extract_strided_slice %6 {offsets = [0, 1], sizes = [4, 512], strides = [1, 1]} : vector<4x640xf32> to vector<4x512xf32>
    %34 = vector.extract_strided_slice %3 {offsets = [0, 4], sizes = [8, 1], strides = [1, 1]} : vector<8x36xf32> to vector<8x1xf32>
    %35 = vector.extract_strided_slice %33 {offsets = [0, 0], sizes = [1, 512], strides = [1, 1]} : vector<4x512xf32> to vector<1x512xf32>
    %36 = vector.broadcast %34 : vector<8x1xf32> to vector<8x512xf32>
    %37 = vector.broadcast %35 : vector<1x512xf32> to vector<8x512xf32>
    %38 = arith.mulf %36, %37 : vector<8x512xf32>
    %39 = arith.addf %32, %38 : vector<8x512xf32>
    %40 = vector.extract_strided_slice %3 {offsets = [0, 5], sizes = [8, 1], strides = [1, 1]} : vector<8x36xf32> to vector<8x1xf32>
    %41 = vector.extract_strided_slice %33 {offsets = [1, 0], sizes = [1, 512], strides = [1, 1]} : vector<4x512xf32> to vector<1x512xf32>
    %42 = vector.broadcast %40 : vector<8x1xf32> to vector<8x512xf32>
    %43 = vector.broadcast %41 : vector<1x512xf32> to vector<8x512xf32>
    %44 = arith.mulf %42, %43 : vector<8x512xf32>
    %45 = arith.addf %39, %44 : vector<8x512xf32>
    %46 = vector.extract_strided_slice %3 {offsets = [0, 6], sizes = [8, 1], strides = [1, 1]} : vector<8x36xf32> to vector<8x1xf32>
    %47 = vector.extract_strided_slice %33 {offsets = [2, 0], sizes = [1, 512], strides = [1, 1]} : vector<4x512xf32> to vector<1x512xf32>
    %48 = vector.broadcast %46 : vector<8x1xf32> to vector<8x512xf32>
    %49 = vector.broadcast %47 : vector<1x512xf32> to vector<8x512xf32>
    %50 = arith.mulf %48, %49 : vector<8x512xf32>
    %51 = arith.addf %45, %50 : vector<8x512xf32>
    %52 = vector.extract_strided_slice %3 {offsets = [0, 7], sizes = [8, 1], strides = [1, 1]} : vector<8x36xf32> to vector<8x1xf32>
    %53 = vector.extract_strided_slice %33 {offsets = [3, 0], sizes = [1, 512], strides = [1, 1]} : vector<4x512xf32> to vector<1x512xf32>
    %54 = vector.broadcast %52 : vector<8x1xf32> to vector<8x512xf32>
    %55 = vector.broadcast %53 : vector<1x512xf32> to vector<8x512xf32>
    %56 = arith.mulf %54, %55 : vector<8x512xf32>
    %57 = arith.addf %51, %56 : vector<8x512xf32>
    %58 = vector.extract_strided_slice %6 {offsets = [0, 2], sizes = [4, 512], strides = [1, 1]} : vector<4x640xf32> to vector<4x512xf32>
    %59 = vector.extract_strided_slice %3 {offsets = [0, 8], sizes = [8, 1], strides = [1, 1]} : vector<8x36xf32> to vector<8x1xf32>
    %60 = vector.extract_strided_slice %58 {offsets = [0, 0], sizes = [1, 512], strides = [1, 1]} : vector<4x512xf32> to vector<1x512xf32>
    %61 = vector.broadcast %59 : vector<8x1xf32> to vector<8x512xf32>
    %62 = vector.broadcast %60 : vector<1x512xf32> to vector<8x512xf32>
    %63 = arith.mulf %61, %62 : vector<8x512xf32>
    %64 = arith.addf %57, %63 : vector<8x512xf32>
    %65 = vector.extract_strided_slice %3 {offsets = [0, 9], sizes = [8, 1], strides = [1, 1]} : vector<8x36xf32> to vector<8x1xf32>
    %66 = vector.extract_strided_slice %58 {offsets = [1, 0], sizes = [1, 512], strides = [1, 1]} : vector<4x512xf32> to vector<1x512xf32>
    %67 = vector.broadcast %65 : vector<8x1xf32> to vector<8x512xf32>
    %68 = vector.broadcast %66 : vector<1x512xf32> to vector<8x512xf32>
    %69 = arith.mulf %67, %68 : vector<8x512xf32>
    %70 = arith.addf %64, %69 : vector<8x512xf32>
    %71 = vector.extract_strided_slice %3 {offsets = [0, 10], sizes = [8, 1], strides = [1, 1]} : vector<8x36xf32> to vector<8x1xf32>
    %72 = vector.extract_strided_slice %58 {offsets = [2, 0], sizes = [1, 512], strides = [1, 1]} : vector<4x512xf32> to vector<1x512xf32>
    %73 = vector.broadcast %71 : vector<8x1xf32> to vector<8x512xf32>
    %74 = vector.broadcast %72 : vector<1x512xf32> to vector<8x512xf32>
    %75 = arith.mulf %73, %74 : vector<8x512xf32>
    %76 = arith.addf %70, %75 : vector<8x512xf32>
    %77 = vector.extract_strided_slice %3 {offsets = [0, 11], sizes = [8, 1], strides = [1, 1]} : vector<8x36xf32> to vector<8x1xf32>
    %78 = vector.extract_strided_slice %58 {offsets = [3, 0], sizes = [1, 512], strides = [1, 1]} : vector<4x512xf32> to vector<1x512xf32>
    %79 = vector.broadcast %77 : vector<8x1xf32> to vector<8x512xf32>
    %80 = vector.broadcast %78 : vector<1x512xf32> to vector<8x512xf32>
    %81 = arith.mulf %79, %80 : vector<8x512xf32>
    %82 = arith.addf %76, %81 : vector<8x512xf32>
    %83 = vector.extract_strided_slice %6 {offsets = [0, 18], sizes = [4, 512], strides = [1, 1]} : vector<4x640xf32> to vector<4x512xf32>
    %84 = vector.extract_strided_slice %3 {offsets = [0, 12], sizes = [8, 1], strides = [1, 1]} : vector<8x36xf32> to vector<8x1xf32>
    %85 = vector.extract_strided_slice %83 {offsets = [0, 0], sizes = [1, 512], strides = [1, 1]} : vector<4x512xf32> to vector<1x512xf32>
    %86 = vector.broadcast %84 : vector<8x1xf32> to vector<8x512xf32>
    %87 = vector.broadcast %85 : vector<1x512xf32> to vector<8x512xf32>
    %88 = arith.mulf %86, %87 : vector<8x512xf32>
    %89 = arith.addf %82, %88 : vector<8x512xf32>
    %90 = vector.extract_strided_slice %3 {offsets = [0, 13], sizes = [8, 1], strides = [1, 1]} : vector<8x36xf32> to vector<8x1xf32>
    %91 = vector.extract_strided_slice %83 {offsets = [1, 0], sizes = [1, 512], strides = [1, 1]} : vector<4x512xf32> to vector<1x512xf32>
    %92 = vector.broadcast %90 : vector<8x1xf32> to vector<8x512xf32>
    %93 = vector.broadcast %91 : vector<1x512xf32> to vector<8x512xf32>
    %94 = arith.mulf %92, %93 : vector<8x512xf32>
    %95 = arith.addf %89, %94 : vector<8x512xf32>
    %96 = vector.extract_strided_slice %3 {offsets = [0, 14], sizes = [8, 1], strides = [1, 1]} : vector<8x36xf32> to vector<8x1xf32>
    %97 = vector.extract_strided_slice %83 {offsets = [2, 0], sizes = [1, 512], strides = [1, 1]} : vector<4x512xf32> to vector<1x512xf32>
    %98 = vector.broadcast %96 : vector<8x1xf32> to vector<8x512xf32>
    %99 = vector.broadcast %97 : vector<1x512xf32> to vector<8x512xf32>
    %100 = arith.mulf %98, %99 : vector<8x512xf32>
    %101 = arith.addf %95, %100 : vector<8x512xf32>
    %102 = vector.extract_strided_slice %3 {offsets = [0, 15], sizes = [8, 1], strides = [1, 1]} : vector<8x36xf32> to vector<8x1xf32>
    %103 = vector.extract_strided_slice %83 {offsets = [3, 0], sizes = [1, 512], strides = [1, 1]} : vector<4x512xf32> to vector<1x512xf32>
    %104 = vector.broadcast %102 : vector<8x1xf32> to vector<8x512xf32>
    %105 = vector.broadcast %103 : vector<1x512xf32> to vector<8x512xf32>
    %106 = arith.mulf %104, %105 : vector<8x512xf32>
    %107 = arith.addf %101, %106 : vector<8x512xf32>
    %108 = vector.extract_strided_slice %6 {offsets = [0, 19], sizes = [4, 512], strides = [1, 1]} : vector<4x640xf32> to vector<4x512xf32>
    %109 = vector.extract_strided_slice %3 {offsets = [0, 16], sizes = [8, 1], strides = [1, 1]} : vector<8x36xf32> to vector<8x1xf32>
    %110 = vector.extract_strided_slice %108 {offsets = [0, 0], sizes = [1, 512], strides = [1, 1]} : vector<4x512xf32> to vector<1x512xf32>
    %111 = vector.broadcast %109 : vector<8x1xf32> to vector<8x512xf32>
    %112 = vector.broadcast %110 : vector<1x512xf32> to vector<8x512xf32>
    %113 = arith.mulf %111, %112 : vector<8x512xf32>
    %114 = arith.addf %107, %113 : vector<8x512xf32>
    %115 = vector.extract_strided_slice %3 {offsets = [0, 17], sizes = [8, 1], strides = [1, 1]} : vector<8x36xf32> to vector<8x1xf32>
    %116 = vector.extract_strided_slice %108 {offsets = [1, 0], sizes = [1, 512], strides = [1, 1]} : vector<4x512xf32> to vector<1x512xf32>
    %117 = vector.broadcast %115 : vector<8x1xf32> to vector<8x512xf32>
    %118 = vector.broadcast %116 : vector<1x512xf32> to vector<8x512xf32>
    %119 = arith.mulf %117, %118 : vector<8x512xf32>
    %120 = arith.addf %114, %119 : vector<8x512xf32>
    %121 = vector.extract_strided_slice %3 {offsets = [0, 18], sizes = [8, 1], strides = [1, 1]} : vector<8x36xf32> to vector<8x1xf32>
    %122 = vector.extract_strided_slice %108 {offsets = [2, 0], sizes = [1, 512], strides = [1, 1]} : vector<4x512xf32> to vector<1x512xf32>
    %123 = vector.broadcast %121 : vector<8x1xf32> to vector<8x512xf32>
    %124 = vector.broadcast %122 : vector<1x512xf32> to vector<8x512xf32>
    %125 = arith.mulf %123, %124 : vector<8x512xf32>
    %126 = arith.addf %120, %125 : vector<8x512xf32>
    %127 = vector.extract_strided_slice %3 {offsets = [0, 19], sizes = [8, 1], strides = [1, 1]} : vector<8x36xf32> to vector<8x1xf32>
    %128 = vector.extract_strided_slice %108 {offsets = [3, 0], sizes = [1, 512], strides = [1, 1]} : vector<4x512xf32> to vector<1x512xf32>
    %129 = vector.broadcast %127 : vector<8x1xf32> to vector<8x512xf32>
    %130 = vector.broadcast %128 : vector<1x512xf32> to vector<8x512xf32>
    %131 = arith.mulf %129, %130 : vector<8x512xf32>
    %132 = arith.addf %126, %131 : vector<8x512xf32>
    %133 = vector.extract_strided_slice %6 {offsets = [0, 20], sizes = [4, 512], strides = [1, 1]} : vector<4x640xf32> to vector<4x512xf32>
    %134 = vector.extract_strided_slice %3 {offsets = [0, 20], sizes = [8, 1], strides = [1, 1]} : vector<8x36xf32> to vector<8x1xf32>
    %135 = vector.extract_strided_slice %133 {offsets = [0, 0], sizes = [1, 512], strides = [1, 1]} : vector<4x512xf32> to vector<1x512xf32>
    %136 = vector.broadcast %134 : vector<8x1xf32> to vector<8x512xf32>
    %137 = vector.broadcast %135 : vector<1x512xf32> to vector<8x512xf32>
    %138 = arith.mulf %136, %137 : vector<8x512xf32>
    %139 = arith.addf %132, %138 : vector<8x512xf32>
    %140 = vector.extract_strided_slice %3 {offsets = [0, 21], sizes = [8, 1], strides = [1, 1]} : vector<8x36xf32> to vector<8x1xf32>
    %141 = vector.extract_strided_slice %133 {offsets = [1, 0], sizes = [1, 512], strides = [1, 1]} : vector<4x512xf32> to vector<1x512xf32>
    %142 = vector.broadcast %140 : vector<8x1xf32> to vector<8x512xf32>
    %143 = vector.broadcast %141 : vector<1x512xf32> to vector<8x512xf32>
    %144 = arith.mulf %142, %143 : vector<8x512xf32>
    %145 = arith.addf %139, %144 : vector<8x512xf32>
    %146 = vector.extract_strided_slice %3 {offsets = [0, 22], sizes = [8, 1], strides = [1, 1]} : vector<8x36xf32> to vector<8x1xf32>
    %147 = vector.extract_strided_slice %133 {offsets = [2, 0], sizes = [1, 512], strides = [1, 1]} : vector<4x512xf32> to vector<1x512xf32>
    %148 = vector.broadcast %146 : vector<8x1xf32> to vector<8x512xf32>
    %149 = vector.broadcast %147 : vector<1x512xf32> to vector<8x512xf32>
    %150 = arith.mulf %148, %149 : vector<8x512xf32>
    %151 = arith.addf %145, %150 : vector<8x512xf32>
    %152 = vector.extract_strided_slice %3 {offsets = [0, 23], sizes = [8, 1], strides = [1, 1]} : vector<8x36xf32> to vector<8x1xf32>
    %153 = vector.extract_strided_slice %133 {offsets = [3, 0], sizes = [1, 512], strides = [1, 1]} : vector<4x512xf32> to vector<1x512xf32>
    %154 = vector.broadcast %152 : vector<8x1xf32> to vector<8x512xf32>
    %155 = vector.broadcast %153 : vector<1x512xf32> to vector<8x512xf32>
    %156 = arith.mulf %154, %155 : vector<8x512xf32>
    %157 = arith.addf %151, %156 : vector<8x512xf32>
    %158 = vector.extract_strided_slice %6 {offsets = [0, 36], sizes = [4, 512], strides = [1, 1]} : vector<4x640xf32> to vector<4x512xf32>
    %159 = vector.extract_strided_slice %3 {offsets = [0, 24], sizes = [8, 1], strides = [1, 1]} : vector<8x36xf32> to vector<8x1xf32>
    %160 = vector.extract_strided_slice %158 {offsets = [0, 0], sizes = [1, 512], strides = [1, 1]} : vector<4x512xf32> to vector<1x512xf32>
    %161 = vector.broadcast %159 : vector<8x1xf32> to vector<8x512xf32>
    %162 = vector.broadcast %160 : vector<1x512xf32> to vector<8x512xf32>
    %163 = arith.mulf %161, %162 : vector<8x512xf32>
    %164 = arith.addf %157, %163 : vector<8x512xf32>
    %165 = vector.extract_strided_slice %3 {offsets = [0, 25], sizes = [8, 1], strides = [1, 1]} : vector<8x36xf32> to vector<8x1xf32>
    %166 = vector.extract_strided_slice %158 {offsets = [1, 0], sizes = [1, 512], strides = [1, 1]} : vector<4x512xf32> to vector<1x512xf32>
    %167 = vector.broadcast %165 : vector<8x1xf32> to vector<8x512xf32>
    %168 = vector.broadcast %166 : vector<1x512xf32> to vector<8x512xf32>
    %169 = arith.mulf %167, %168 : vector<8x512xf32>
    %170 = arith.addf %164, %169 : vector<8x512xf32>
    %171 = vector.extract_strided_slice %3 {offsets = [0, 26], sizes = [8, 1], strides = [1, 1]} : vector<8x36xf32> to vector<8x1xf32>
    %172 = vector.extract_strided_slice %158 {offsets = [2, 0], sizes = [1, 512], strides = [1, 1]} : vector<4x512xf32> to vector<1x512xf32>
    %173 = vector.broadcast %171 : vector<8x1xf32> to vector<8x512xf32>
    %174 = vector.broadcast %172 : vector<1x512xf32> to vector<8x512xf32>
    %175 = arith.mulf %173, %174 : vector<8x512xf32>
    %176 = arith.addf %170, %175 : vector<8x512xf32>
    %177 = vector.extract_strided_slice %3 {offsets = [0, 27], sizes = [8, 1], strides = [1, 1]} : vector<8x36xf32> to vector<8x1xf32>
    %178 = vector.extract_strided_slice %158 {offsets = [3, 0], sizes = [1, 512], strides = [1, 1]} : vector<4x512xf32> to vector<1x512xf32>
    %179 = vector.broadcast %177 : vector<8x1xf32> to vector<8x512xf32>
    %180 = vector.broadcast %178 : vector<1x512xf32> to vector<8x512xf32>
    %181 = arith.mulf %179, %180 : vector<8x512xf32>
    %182 = arith.addf %176, %181 : vector<8x512xf32>
    %183 = vector.extract_strided_slice %6 {offsets = [0, 37], sizes = [4, 512], strides = [1, 1]} : vector<4x640xf32> to vector<4x512xf32>
    %184 = vector.extract_strided_slice %3 {offsets = [0, 28], sizes = [8, 1], strides = [1, 1]} : vector<8x36xf32> to vector<8x1xf32>
    %185 = vector.extract_strided_slice %183 {offsets = [0, 0], sizes = [1, 512], strides = [1, 1]} : vector<4x512xf32> to vector<1x512xf32>
    %186 = vector.broadcast %184 : vector<8x1xf32> to vector<8x512xf32>
    %187 = vector.broadcast %185 : vector<1x512xf32> to vector<8x512xf32>
    %188 = arith.mulf %186, %187 : vector<8x512xf32>
    %189 = arith.addf %182, %188 : vector<8x512xf32>
    %190 = vector.extract_strided_slice %3 {offsets = [0, 29], sizes = [8, 1], strides = [1, 1]} : vector<8x36xf32> to vector<8x1xf32>
    %191 = vector.extract_strided_slice %183 {offsets = [1, 0], sizes = [1, 512], strides = [1, 1]} : vector<4x512xf32> to vector<1x512xf32>
    %192 = vector.broadcast %190 : vector<8x1xf32> to vector<8x512xf32>
    %193 = vector.broadcast %191 : vector<1x512xf32> to vector<8x512xf32>
    %194 = arith.mulf %192, %193 : vector<8x512xf32>
    %195 = arith.addf %189, %194 : vector<8x512xf32>
    %196 = vector.extract_strided_slice %3 {offsets = [0, 30], sizes = [8, 1], strides = [1, 1]} : vector<8x36xf32> to vector<8x1xf32>
    %197 = vector.extract_strided_slice %183 {offsets = [2, 0], sizes = [1, 512], strides = [1, 1]} : vector<4x512xf32> to vector<1x512xf32>
    %198 = vector.broadcast %196 : vector<8x1xf32> to vector<8x512xf32>
    %199 = vector.broadcast %197 : vector<1x512xf32> to vector<8x512xf32>
    %200 = arith.mulf %198, %199 : vector<8x512xf32>
    %201 = arith.addf %195, %200 : vector<8x512xf32>
    %202 = vector.extract_strided_slice %3 {offsets = [0, 31], sizes = [8, 1], strides = [1, 1]} : vector<8x36xf32> to vector<8x1xf32>
    %203 = vector.extract_strided_slice %183 {offsets = [3, 0], sizes = [1, 512], strides = [1, 1]} : vector<4x512xf32> to vector<1x512xf32>
    %204 = vector.broadcast %202 : vector<8x1xf32> to vector<8x512xf32>
    %205 = vector.broadcast %203 : vector<1x512xf32> to vector<8x512xf32>
    %206 = arith.mulf %204, %205 : vector<8x512xf32>
    %207 = arith.addf %201, %206 : vector<8x512xf32>
    %208 = vector.extract_strided_slice %6 {offsets = [0, 38], sizes = [4, 512], strides = [1, 1]} : vector<4x640xf32> to vector<4x512xf32>
    %209 = vector.extract_strided_slice %3 {offsets = [0, 32], sizes = [8, 1], strides = [1, 1]} : vector<8x36xf32> to vector<8x1xf32>
    %210 = vector.extract_strided_slice %208 {offsets = [0, 0], sizes = [1, 512], strides = [1, 1]} : vector<4x512xf32> to vector<1x512xf32>
    %211 = vector.broadcast %209 : vector<8x1xf32> to vector<8x512xf32>
    %212 = vector.broadcast %210 : vector<1x512xf32> to vector<8x512xf32>
    %213 = arith.mulf %211, %212 : vector<8x512xf32>
    %214 = arith.addf %207, %213 : vector<8x512xf32>
    %215 = vector.extract_strided_slice %3 {offsets = [0, 33], sizes = [8, 1], strides = [1, 1]} : vector<8x36xf32> to vector<8x1xf32>
    %216 = vector.extract_strided_slice %208 {offsets = [1, 0], sizes = [1, 512], strides = [1, 1]} : vector<4x512xf32> to vector<1x512xf32>
    %217 = vector.broadcast %215 : vector<8x1xf32> to vector<8x512xf32>
    %218 = vector.broadcast %216 : vector<1x512xf32> to vector<8x512xf32>
    %219 = arith.mulf %217, %218 : vector<8x512xf32>
    %220 = arith.addf %214, %219 : vector<8x512xf32>
    %221 = vector.extract_strided_slice %3 {offsets = [0, 34], sizes = [8, 1], strides = [1, 1]} : vector<8x36xf32> to vector<8x1xf32>
    %222 = vector.extract_strided_slice %208 {offsets = [2, 0], sizes = [1, 512], strides = [1, 1]} : vector<4x512xf32> to vector<1x512xf32>
    %223 = vector.broadcast %221 : vector<8x1xf32> to vector<8x512xf32>
    %224 = vector.broadcast %222 : vector<1x512xf32> to vector<8x512xf32>
    %225 = arith.mulf %223, %224 : vector<8x512xf32>
    %226 = arith.addf %220, %225 : vector<8x512xf32>
    %227 = vector.extract_strided_slice %3 {offsets = [0, 35], sizes = [8, 1], strides = [1, 1]} : vector<8x36xf32> to vector<8x1xf32>
    %228 = vector.extract_strided_slice %208 {offsets = [3, 0], sizes = [1, 512], strides = [1, 1]} : vector<4x512xf32> to vector<1x512xf32>
    %229 = vector.broadcast %227 : vector<8x1xf32> to vector<8x512xf32>
    %230 = vector.broadcast %228 : vector<1x512xf32> to vector<8x512xf32>
    %231 = arith.mulf %229, %230 : vector<8x512xf32>
    %232 = arith.addf %226, %231 : vector<8x512xf32>
    %c0_6 = arith.constant 0 : index
    %c0_7 = arith.constant 0 : index
    %233 = vector.load %arg4[%c0_6, %c0_7] : memref<1x512xf32, #tpu.memory_space<vmem>>, vector<1x512xf32>
    %234 = vector.broadcast %233 : vector<1x512xf32> to vector<8x512xf32>
    %235 = arith.mulf %232, %234 : vector<8x512xf32>
    %c0_8 = arith.constant 0 : index
    %c0_9 = arith.constant 0 : index
    %236 = vector.load %arg5[%c0_8, %c0_9] : memref<8x1xf32, #tpu.memory_space<vmem>>, vector<8x1xf32>
    %cst_10 = arith.constant dense<0.000000e+00> : vector<8xf32>
    %237 = vector.multi_reduction <add>, %235, %cst_10 [1] : vector<8x512xf32> to vector<8xf32>
    %238 = vector.shape_cast %237 : vector<8xf32> to vector<8x1xf32>
    %239 = arith.addf %236, %238 : vector<8x1xf32>
    %c0_11 = arith.constant 0 : index
    %c0_12 = arith.constant 0 : index
    %240 = vector.load %arg5[%c0_11, %c0_12] : memref<8x1xf32, #tpu.memory_space<vmem>>, vector<8x1xf32>
    tpu.vector_store %arg5[%c0_11, %c0_12], %239 {strides = array<i32>} : memref<8x1xf32, #tpu.memory_space<vmem>>, vector<8x1xf32>,
    %c0_13 = arith.constant 0 : index
    %c0_14 = arith.constant 0 : index
    %241 = vector.load %arg6[%c0_13, %c0_14] : memref<8x1xf32, #tpu.memory_space<vmem>>, vector<8x1xf32>
    %242 = arith.mulf %235, %232 : vector<8x512xf32>
    %cst_15 = arith.constant dense<0.000000e+00> : vector<8xf32>
    %243 = vector.multi_reduction <add>, %242, %cst_15 [1] : vector<8x512xf32> to vector<8xf32>
    %244 = vector.shape_cast %243 : vector<8xf32> to vector<8x1xf32>
    %245 = arith.addf %241, %244 : vector<8x1xf32>
    %c0_16 = arith.constant 0 : index
    %c0_17 = arith.constant 0 : index
    %246 = vector.load %arg6[%c0_16, %c0_17] : memref<8x1xf32, #tpu.memory_space<vmem>>, vector<8x1xf32>
    tpu.vector_store %arg6[%c0_16, %c0_17], %245 {strides = array<i32>} : memref<8x1xf32, #tpu.memory_space<vmem>>, vector<8x1xf32>,
    return
  }
  func.func @transform_0(%arg0: i32) -> (i32, i32) {
    %c0_i32 = arith.constant 0 : i32
    %c0_i32_0 = arith.constant 0 : i32
    %c0_i32_1 = arith.constant 0 : i32
    return %c0_i32, %c0_i32_0 : i32, i32
  }
  func.func @transform_1(%arg0: i32) -> (i32, i32) {
    %c0_i32 = arith.constant 0 : i32
    %c0_i32_0 = arith.constant 0 : i32
    return %c0_i32, %arg0 : i32, i32
  }
  func.func @transform_2(%arg0: i32) -> (i32, i32) {
    %c1_i32 = arith.constant 1 : i32
    %0 = arith.addi %arg0, %c1_i32 : i32
    %c4_i32 = arith.constant 4 : i32
    %1 = arith.muli %0, %c4_i32 : i32
    %c0_i32 = arith.constant 0 : i32
    %c0_i32_0 = arith.constant 0 : i32
    return %c0_i32, %1 : i32, i32
  }
  func.func @transform_3(%arg0: i32) -> (i32, i32) {
    %c0_i32 = arith.constant 0 : i32
    %c0_i32_0 = arith.constant 0 : i32
    return %c0_i32, %arg0 : i32, i32
  }
  func.func @transform_4(%arg0: i32) -> (i32, i32) {
    %c0_i32 = arith.constant 0 : i32
    %c0_i32_0 = arith.constant 0 : i32
    %c0_i32_1 = arith.constant 0 : i32
    return %c0_i32, %c0_i32_0 : i32, i32
  }
  func.func @transform_5(%arg0: i32) -> (i32, i32) {
    %c0_i32 = arith.constant 0 : i32
    %c0_i32_0 = arith.constant 0 : i32
    %c0_i32_1 = arith.constant 0 : i32
    return %c0_i32, %c0_i32_0 : i32, i32
  }
}

</mosaic_0001>

<llo_original>
// kernel: tpu_custom_call.1
$region0: #{tpu_custom_call.1}
  #allocation0 [shape = 'u32[]', space=smem, size = 0x4, offset = 0x4, fixed_abs, tag = 'smem constant byte address 0x4 - core index']
  #allocation1 [shape = 'u32[144,128]{1,0:T(1,128)}', space=vmem, size = 0x12000, scoped, tag = 'internal scratch']
  %s0 = inlined_call_operand.hbm [shape: f32[8,36], index: 0, kind: input, shape index: {}]
  %s1 = inlined_call_operand.hbm [shape: f32[4,1536], index: 1, kind: input, shape index: {}]
  %s2 = inlined_call_operand.hbm [shape: f32[4,1536], index: 2, kind: input, shape index: {}]
  %s3 = inlined_call_operand.vmem [shape: f32[1,1024], index: 3, kind: input, shape index: {}]
  %s4 = inlined_call_operand.vmem [shape: f32[8,1], index: 4, kind: output, shape index: {0}]
  %s5 = inlined_call_operand.vmem [shape: f32[8,1], index: 5, kind: output, shape index: {1}]
  %6 = xla_tuple %s4, %s5
  %s7 = sld [smem:[#allocation0]]
  $region73: #{tpu_custom_call.1} parent=0
    _
  %s9 = ssub.s32 1, %s7
  %s10 = scalar_select 0, %s9, %s7
  $region1: #{tpu_custom_call.1} parent=0
    #allocation2 [shape = 'u8[4096]{0}', space=vmem, size = 0x1000, scoped, tag = 'input window, operand 0, single buffered']
    #allocation3 [shape = 's32[2]{0}', space=sflag, size = 0x8, scoped, tag = 'scoped memory for tpu_custom_call.1']
    #allocation4 [shape = 'u8[16384]{0}', space=vmem, size = 0x4000, scoped, tag = 'input window, operand 1']
    #allocation5 [shape = 's32[2]{0}', space=sflag, size = 0x8, scoped, tag = 'scoped memory for tpu_custom_call.1']
    #allocation6 [shape = 'u8[4096]{0}', space=vmem, size = 0x1000, scoped, tag = 'input window, operand 2']
    %11 = vsyncpa [#allocation3], 0
    %12 = vsyncpa [#allocation5], 0
    %s13 = scalar_lea.sflag [#allocation5], 1
    %14 = vsyncpa %s13, 0
    loop: start=0, step=1, limit=4
    $region2: #{tpu_custom_call.1} parent=1 // loop_pre_header
      _
    $region3: #{tpu_custom_call.1} parent=1 // loop_header
      %s16 = sphi 0, %s20
      %p17 = scmp.ge.s32.totalorder %s16, 4
      %s24 = sphi 0, %s24
      %s26 = sphi 0, %s24
      %s27 = sphi 0, %s26
      %s41 = sphi 0, %s27
      %s47 = sphi 0, %s49
      %s50 = sphi 0, %s47
      %s51 = sphi 0, %s50
      %s67 = sphi 0, %s51
      %s77 = sphi 0, %s79
      %s80 = sphi 0, %s77
      %s81 = sphi 0, %s80
      %s97 = sphi 0, %s81
      %s103 = sphi 0, %s105
      %s106 = sphi 0, %s103
      %s107 = sphi 0, %s106
      %s123 = sphi 0, %s107
      %s127 = sphi 0, %s127
      %s129 = sphi 0, %s127
      %s130 = sphi 0, %s129
      %s144 = sphi 0, %s130
      %s148 = sphi 0, %s148
      %s150 = sphi 0, %s148
      %s151 = sphi 0, %s150
      %s165 = sphi 0, %s151
    $region4: #{tpu_custom_call.1} parent=1 // loop_header_branch
      %19 = sbr.rel (%p17) target = $region8
    $region5: #{tpu_custom_call.1} parent=1 // loop_body
      %s21 = ssub.s32 %s16, 1
      %s22 = ssub.s32 %s16, 2
      %s23 = sadd.s32 %s16, 1
      %s25 = sadd.s32 %s24, 1
      %p28 = scmp.eq.s32.totalorder %s16, 1
      %p29 = scmp.ne.s32.totalorder %s24, %s26
      %p30 = scmp.eq.s32.totalorder %s16, 0
      %p31 = por %p29, %p30
      %p32 = scmp.ne.s32.totalorder %s24, %s26
      %p33 = scmp.eq.s32.totalorder %s21, 1
      %p34 = por %p32, %p33
      %p35 = scmp.ne.s32.totalorder %s26, %s27
      %p36 = scmp.eq.s32.totalorder %s21, 0
      %p37 = por %p35, %p36
      %p38 = scmp.ne.s32.totalorder %s26, %s27
      %p39 = scmp.eq.s32.totalorder %s22, 1
      %p40 = por %p38, %p39
      %p42 = scmp.ne.s32.totalorder %s27, %s41
      %p43 = scmp.eq.s32.totalorder %s22, 0
      %p44 = por %p42, %p43
      %s45 = ssub.s32 %s16, %s23
      %p46 = scmp.eq.s32.totalorder %s45, 0
      %s48 = sadd.s32 %s47, 1
      %s49 = scalar_select %p46, %s47, %s48
      %p52 = pneg %p46
      %p53 = scmp.eq.s32.totalorder %s16, 1
      %p54 = por %p52, %p53
      %p55 = scmp.ne.s32.totalorder %s47, %s50
      %p56 = scmp.eq.s32.totalorder %s16, 0
      %p57 = por %p55, %p56
      %p58 = scmp.ne.s32.totalorder %s47, %s50
      %p59 = scmp.eq.s32.totalorder %s21, 1
      %p60 = por %p58, %p59
      %p61 = scmp.ne.s32.totalorder %s50, %s51
      %p62 = scmp.eq.s32.totalorder %s21, 0
      %p63 = por %p61, %p62
      %p64 = scmp.ne.s32.totalorder %s50, %s51
      %p65 = scmp.eq.s32.totalorder %s22, 1
      %p66 = por %p64, %p65
      %p68 = scmp.ne.s32.totalorder %s51, %s67
      %p69 = scmp.eq.s32.totalorder %s22, 0
      %p70 = por %p68, %p69
      %s71 = sadd.s32 %s16, 1
      %s72 = smul.u32 %s71, 4
      %s73 = sadd.s32 %s23, 1
      %s74 = smul.u32 %s73, 4
      %s75 = ssub.s32 %s72, %s74
      %p76 = scmp.eq.s32.totalorder %s75, 0
      %s78 = sadd.s32 %s77, 1
      %s79 = scalar_select %p76, %s77, %s78
      %p82 = pneg %p76
      %p83 = scmp.eq.s32.totalorder %s16, 1
      %p84 = por %p82, %p83
      %p85 = scmp.ne.s32.totalorder %s77, %s80
      %p86 = scmp.eq.s32.totalorder %s16, 0
      %p87 = por %p85, %p86
      %p88 = scmp.ne.s32.totalorder %s77, %s80
      %p89 = scmp.eq.s32.totalorder %s21, 1
      %p90 = por %p88, %p89
      %p91 = scmp.ne.s32.totalorder %s80, %s81
      %p92 = scmp.eq.s32.totalorder %s21, 0
      %p93 = por %p91, %p92
      %p94 = scmp.ne.s32.totalorder %s80, %s81
      %p95 = scmp.eq.s32.totalorder %s22, 1
      %p96 = por %p94, %p95
      %p98 = scmp.ne.s32.totalorder %s81, %s97
      %p99 = scmp.eq.s32.totalorder %s22, 0
      %p100 = por %p98, %p99
      %s101 = ssub.s32 %s16, %s23
      %p102 = scmp.eq.s32.totalorder %s101, 0
      %s104 = sadd.s32 %s103, 1
      %s105 = scalar_select %p102, %s103, %s104
      %p108 = pneg %p102
      %p109 = scmp.eq.s32.totalorder %s16, 1
      %p110 = por %p108, %p109
      %p111 = scmp.ne.s32.totalorder %s103, %s106
      %p112 = scmp.eq.s32.totalorder %s16, 0
      %p113 = por %p111, %p112
      %p114 = scmp.ne.s32.totalorder %s103, %s106
      %p115 = scmp.eq.s32.totalorder %s21, 1
      %p116 = por %p114, %p115
      %p117 = scmp.ne.s32.totalorder %s106, %s107
      %p118 = scmp.eq.s32.totalorder %s21, 0
      %p119 = por %p117, %p118
      %p120 = scmp.ne.s32.totalorder %s106, %s107
      %p121 = scmp.eq.s32.totalorder %s22, 1
      %p122 = por %p120, %p121
      %p124 = scmp.ne.s32.totalorder %s107, %s123
      %p125 = scmp.eq.s32.totalorder %s22, 0
      %p126 = por %p124, %p125
      %s128 = sadd.s32 %s127, 1
      %p131 = scmp.eq.s32.totalorder %s16, 1
      %p132 = scmp.ne.s32.totalorder %s127, %s129
      %p133 = scmp.eq.s32.totalorder %s16, 0
      %p134 = por %p132, %p133
      %p135 = scmp.ne.s32.totalorder %s127, %s129
      %p136 = scmp.eq.s32.totalorder %s21, 1
      %p137 = por %p135, %p136
      %p138 = scmp.ne.s32.totalorder %s129, %s130
      %p139 = scmp.eq.s32.totalorder %s21, 0
      %p140 = por %p138, %p139
      %p141 = scmp.ne.s32.totalorder %s129, %s130
      %p142 = scmp.eq.s32.totalorder %s22, 1
      %p143 = por %p141, %p142
      %p145 = scmp.ne.s32.totalorder %s130, %s144
      %p146 = scmp.eq.s32.totalorder %s22, 0
      %p147 = por %p145, %p146
      %s149 = sadd.s32 %s148, 1
      %p152 = scmp.eq.s32.totalorder %s16, 1
      %p153 = scmp.ne.s32.totalorder %s148, %s150
      %p154 = scmp.eq.s32.totalorder %s16, 0
      %p155 = por %p153, %p154
      %p156 = scmp.ne.s32.totalorder %s148, %s150
      %p157 = scmp.eq.s32.totalorder %s21, 1
      %p158 = por %p156, %p157
      %p159 = scmp.ne.s32.totalorder %s150, %s151
      %p160 = scmp.eq.s32.totalorder %s21, 0
      %p161 = por %p159, %p160
      %p162 = scmp.ne.s32.totalorder %s150, %s151
      %p163 = scmp.eq.s32.totalorder %s22, 1
      %p164 = por %p162, %p163
      %p166 = scmp.ne.s32.totalorder %s151, %s165
      %p167 = scmp.eq.s32.totalorder %s22, 0
      %p168 = por %p166, %p167
      %p169 = scmp.le.s32.totalorder 1, %s16
      %p170 = scmp.lt.s32.totalorder %s16, 3
      %p171 = pnand %p169, %p170
      %p172 = pneg %p171
      // Predicated region
      $region9: #{tpu_custom_call.1} parent=5 // pred_check
        _
      $region10: #{tpu_custom_call.1} parent=5 // pred_check_branch
        %174 = sbr.rel (%p171) target = $region12
      $region11: #{tpu_custom_call.1} parent=5 // pred_region
        %s175 = ssub.s32 %s16, 1
        // Predicated region
        $region13: #{tpu_custom_call.1} parent=11 // pred_check
          %p176 = pneg %p37
        $region14: #{tpu_custom_call.1} parent=11 // pred_check_branch
          %178 = sbr.rel (%p176) target = $region16
        $region15: #{tpu_custom_call.1} parent=11 // pred_region
          %s180 = ssub.s32 128, 128
          %181 = vsyncadd [#allocation3], %s180
          %s183 = sshll.u32 [#allocation2], 4
          %s184 = int_to_ptr.vmem [resolvable:$true] %s183
          %186 = dma.hbm_to_vmem [thread:$0]  %s0, 128, %s184, [#allocation3]
        $region16: #{tpu_custom_call.1} parent=11 // pred_fallthru
          _
      $region12: #{tpu_custom_call.1} parent=5 // pred_fallthru
        _
      %p187 = scmp.lt.s32.totalorder %s16, 2
      // Predicated region
      $region17: #{tpu_custom_call.1} parent=5 // pred_check
        %p188 = pneg %p187
      $region18: #{tpu_custom_call.1} parent=5 // pred_check_branch
        %190 = sbr.rel (%p188) target = $region20
      $region19: #{tpu_custom_call.1} parent=5 // pred_region
        // Predicated region
        $region21: #{tpu_custom_call.1} parent=19 // pred_check
          %p191 = pneg %p57
        $region22: #{tpu_custom_call.1} parent=19 // pred_check_branch
          %193 = sbr.rel (%p191) target = $region24
        $region23: #{tpu_custom_call.1} parent=19 // pred_region
          %s194 = sand.u32 %s16, 1
          %s195 = scalar_lea.sflag [#allocation5], %s194
          %s196 = sand.u32 %s47, 1
          %s197 = smul.addr %s196, 16
          %s198 = scalar_lea.vmem [#allocation4], %s197
          %s199 = smul.u32 4, %s16
          %s201 = ssub.s32 256, 256
          %202 = vsyncadd %s195, %s201
          %s203 = smul.addr %s199, 64
          %s204 = scalar_lea.hbm %s1, %s203
          %s206 = sshll.u32 %s198, 4
          %s207 = int_to_ptr.vmem [resolvable:$true] %s206
          %209 = dma.hbm_to_vmem [thread:$0]  %s204, 256, %s207, %s195
        $region24: #{tpu_custom_call.1} parent=19 // pred_fallthru
          _
        // Predicated region
        $region25: #{tpu_custom_call.1} parent=19 // pred_check
          %p210 = pneg %p87
        $region26: #{tpu_custom_call.1} parent=19 // pred_check_branch
          %212 = sbr.rel (%p210) target = $region28
        $region27: #{tpu_custom_call.1} parent=19 // pred_region
          %s213 = sand.u32 %s16, 1
          %s214 = scalar_lea.sflag [#allocation5], %s213
          %s215 = sand.u32 %s77, 1
          %s216 = smul.addr %s215, 4
          %s217 = scalar_lea.vmem [#allocation6], %s216
          %s218 = sadd.s32 %s16, 1
          %s219 = smul.u32 %s218, 4
          %s221 = ssub.s32 64, 64
          %222 = vsyncadd %s214, %s221
          %s223 = smul.addr %s219, 64
          %s224 = scalar_lea.hbm %s2, %s223
          %s226 = sshll.u32 %s217, 4
          %s227 = int_to_ptr.vmem [resolvable:$true] %s226
          %229 = dma.hbm_to_vmem [thread:$0]  %s224, 64, %s227, %s214
        $region28: #{tpu_custom_call.1} parent=19 // pred_fallthru
          _
        // Predicated region
        $region29: #{tpu_custom_call.1} parent=19 // pred_check
          %p230 = pneg %p113
        $region30: #{tpu_custom_call.1} parent=19 // pred_check_branch
          %232 = sbr.rel (%p230) target = $region32
        $region31: #{tpu_custom_call.1} parent=19 // pred_region
          %s233 = smul.u32 4, %s16
          %p234 = scmp.lt.s32.totalorder %s233, 7
          %s235 = scalar_select %p234, %s233, 7
          %s236 = scalar_lea.vmem %s3, %s235
          %s237 = smul.u32 4, %s16
        $region32: #{tpu_custom_call.1} parent=19 // pred_fallthru
          _
      $region20: #{tpu_custom_call.1} parent=5 // pred_fallthru
        _
      %p238 = scmp.le.s32.totalorder 1, %s16
      %p239 = scmp.lt.s32.totalorder %s16, 3
      %p240 = pnand %p238, %p239
      %p241 = pneg %p240
      // Predicated region
      $region33: #{tpu_custom_call.1} parent=5 // pred_check
        _
      $region34: #{tpu_custom_call.1} parent=5 // pred_check_branch
        %243 = sbr.rel (%p240) target = $region36
      $region35: #{tpu_custom_call.1} parent=5 // pred_region
        %s244 = ssub.s32 %s16, 1
        // Predicated region
        $region37: #{tpu_custom_call.1} parent=35 // pred_check
          %p245 = pneg %p37
        $region38: #{tpu_custom_call.1} parent=35 // pred_check_branch
          %247 = sbr.rel (%p245) target = $region40
        $region39: #{tpu_custom_call.1} parent=35 // pred_region
          %248 = dma.done [#allocation3], 128
        $region40: #{tpu_custom_call.1} parent=35 // pred_fallthru
          _
        %s249 = sand.u32 %s21, 1
        %s250 = scalar_lea.sflag [#allocation5], %s249
        %s251 = sand.u32 %s50, 1
        %s252 = smul.addr %s251, 16
        %s253 = scalar_lea.vmem [#allocation4], %s252
        // Predicated region
        $region41: #{tpu_custom_call.1} parent=35 // pred_check
          %p254 = pneg %p63
        $region42: #{tpu_custom_call.1} parent=35 // pred_check_branch
          %256 = sbr.rel (%p254) target = $region44
        $region43: #{tpu_custom_call.1} parent=35 // pred_region
          %257 = dma.done %s250, 256
        $region44: #{tpu_custom_call.1} parent=35 // pred_fallthru
          _
        %s258 = sand.u32 %s21, 1
        %s259 = scalar_lea.sflag [#allocation5], %s258
        %s260 = sand.u32 %s80, 1
        %s261 = smul.addr %s260, 4
        %s262 = scalar_lea.vmem [#allocation6], %s261
        // Predicated region
        $region45: #{tpu_custom_call.1} parent=35 // pred_check
          %p263 = pneg %p93
        $region46: #{tpu_custom_call.1} parent=35 // pred_check_branch
          %265 = sbr.rel (%p263) target = $region48
        $region47: #{tpu_custom_call.1} parent=35 // pred_region
          %266 = dma.done %s259, 64
        $region48: #{tpu_custom_call.1} parent=35 // pred_fallthru
          _
        %p267 = pneg %p37
        %p268 = pneg %p34
        %s269 = sand.u32 %s21, 1
        %s270 = scalar_lea.sflag [#allocation5], %s269
        %s271 = sand.u32 %s50, 1
        %s272 = smul.addr %s271, 16
        %s273 = scalar_lea.vmem [#allocation4], %s272
        %p274 = pneg %p63
        %p275 = pneg %p60
        %s276 = sand.u32 %s21, 1
        %s277 = scalar_lea.sflag [#allocation5], %s276
        %s278 = sand.u32 %s80, 1
        %s279 = smul.addr %s278, 4
        %s280 = scalar_lea.vmem [#allocation6], %s279
        %p281 = pneg %p93
        %p282 = pneg %p90
        %s283 = smul.u32 4, %s21
        %p284 = scmp.lt.s32.totalorder %s283, 7
        %s285 = scalar_select %p284, %s283, 7
        %s286 = scalar_lea.vmem %s3, %s285
        %p287 = pneg %p119
        %p288 = pneg %p116
        %p289 = pneg %p140
        %p290 = pneg %p137
        %p291 = pneg %p161
        %p292 = pneg %p158
        %s293 = smul.u32 4, %s21
        %s294 = sadd.s32 %s21, 1
        %s295 = smul.u32 %s294, 4
        %s296 = smul.u32 4, %s21
        %p297 = scmp.lt.s32.totalorder %s296, 7
        %s298 = scalar_select %p297, %s296, 7
        %s299 = scalar_lea.vmem %s3, %s298
        %s300 = smul.u32 4, %s21
        %p301 = scmp.eq.s32.totalorder %s21, 0
        // Predicated region
        $region49: #{tpu_custom_call.1} parent=35 // pred_check
          %p302 = pneg %p301
        $region50: #{tpu_custom_call.1} parent=35 // pred_check_branch
          %304 = sbr.rel (%p302) target = $region52
        $region51: #{tpu_custom_call.1} parent=35 // pred_region
          %vm305 = vcmask 7168
          %306 = vst.msk [vmem:[%s4] sm:$0xff] %vm305, 0.0
          %307 = vst.msk [vmem:[%s5] sm:$0xff] %vm305, 0.0
        $region52: #{tpu_custom_call.1} parent=35 // pred_fallthru
          _
        %v308 = vld [vmem:[#allocation2] sm:$0xff]
        %v309 = vld [vmem:[%s253] sm:$0xff]
        %v310 = vld [vmem:[%s253 + $0x8] sm:$0xff]
        %v311 = vld [vmem:[%s262] sm:$0xf]
        %v314 = vcombine.high %v309, %v309
        %v315 = vcombine.high %v310, %v310
        %319 = vset.pattern.permute.xlu0 0
        %320 = vperm.xlu0 %319, %v308
        %v321 = vpop.permute.xlu0 %320
        %v323 = vlaneseq
        %v324 = vshrl.u32 %v323, 7
        %v325 = vsub.s32 0, %v324
        %v326 = vrot.slane %v309, %v325
        %v327 = vlaneseq
        %v328 = vshrl.u32 %v327, 7
        %v329 = vsub.s32 0, %v328
        %v330 = vrot.slane %v314, %v329
        %v331 = vlaneseq
        %v332 = vshrl.u32 %v331, 7
        %v333 = vsub.s32 0, %v332
        %v334 = vrot.slane %v310, %v333
        %v335 = vlaneseq
        %v336 = vshrl.u32 %v335, 7
        %v337 = vsub.s32 0, %v336
        %v338 = vrot.slane %v315, %v337
        %v339 = vmul.f32 %v321, %v326
        %v340 = vmul.f32 %v321, %v330
        %v341 = vmul.f32 %v321, %v334
        %v342 = vmul.f32 %v321, %v338
        %v343 = vadd.f32 %v339, 0.0
        %v344 = vadd.f32 %v340, 0.0
        %v345 = vadd.f32 %v341, 0.0
        %v346 = vadd.f32 %v342, 0.0
        %347 = vset.pattern.permute.xlu0 1
        %348 = vperm.xlu0 %347, %v308
        %v349 = vpop.permute.xlu0 %348
        %v351 = vlaneseq
        %v352 = vshrl.u32 %v351, 7
        %v353 = vsub.s32 1, %v352
        %v354 = vrot.slane %v309, %v353
        %v355 = vlaneseq
        %v356 = vshrl.u32 %v355, 7
        %v357 = vsub.s32 1, %v356
        %v358 = vrot.slane %v314, %v357
        %v359 = vlaneseq
        %v360 = vshrl.u32 %v359, 7
        %v361 = vsub.s32 1, %v360
        %v362 = vrot.slane %v310, %v361
        %v363 = vlaneseq
        %v364 = vshrl.u32 %v363, 7
        %v365 = vsub.s32 1, %v364
        %v366 = vrot.slane %v315, %v365
        %v367 = vmul.f32 %v349, %v354
        %v368 = vmul.f32 %v349, %v358
        %v369 = vmul.f32 %v349, %v362
        %v370 = vmul.f32 %v349, %v366
        %v371 = vadd.f32 %v343, %v367
        %v372 = vadd.f32 %v344, %v368
        %v373 = vadd.f32 %v345, %v369
        %v374 = vadd.f32 %v346, %v370
        %375 = vset.pattern.permute.xlu0 2
        %376 = vperm.xlu0 %375, %v308
        %v377 = vpop.permute.xlu0 %376
        %v379 = vlaneseq
        %v380 = vshrl.u32 %v379, 7
        %v381 = vsub.s32 2, %v380
        %v382 = vrot.slane %v309, %v381
        %v383 = vlaneseq
        %v384 = vshrl.u32 %v383, 7
        %v385 = vsub.s32 2, %v384
        %v386 = vrot.slane %v314, %v385
        %v387 = vlaneseq
        %v388 = vshrl.u32 %v387, 7
        %v389 = vsub.s32 2, %v388
        %v390 = vrot.slane %v310, %v389
        %v391 = vlaneseq
        %v392 = vshrl.u32 %v391, 7
        %v393 = vsub.s32 2, %v392
        %v394 = vrot.slane %v315, %v393
        %v395 = vmul.f32 %v377, %v382
        %v396 = vmul.f32 %v377, %v386
        %v397 = vmul.f32 %v377, %v390
        %v398 = vmul.f32 %v377, %v394
        %v399 = vadd.f32 %v371, %v395
        %v400 = vadd.f32 %v372, %v396
        %v401 = vadd.f32 %v373, %v397
        %v402 = vadd.f32 %v374, %v398
        %403 = vset.pattern.permute.xlu0 3
        %404 = vperm.xlu0 %403, %v308
        %v405 = vpop.permute.xlu0 %404
        %v407 = vlaneseq
        %v408 = vshrl.u32 %v407, 7
        %v409 = vsub.s32 3, %v408
        %v410 = vrot.slane %v309, %v409
        %v411 = vlaneseq
        %v412 = vshrl.u32 %v411, 7
        %v413 = vsub.s32 3, %v412
        %v414 = vrot.slane %v314, %v413
        %v415 = vlaneseq
        %v416 = vshrl.u32 %v415, 7
        %v417 = vsub.s32 3, %v416
        %v418 = vrot.slane %v310, %v417
        %v419 = vlaneseq
        %v420 = vshrl.u32 %v419, 7
        %v421 = vsub.s32 3, %v420
        %v422 = vrot.slane %v315, %v421
        %v423 = vmul.f32 %v405, %v410
        %v424 = vmul.f32 %v405, %v414
        %v425 = vmul.f32 %v405, %v418
        %v426 = vmul.f32 %v405, %v422
        %v427 = vadd.f32 %v399, %v423
        %v428 = vadd.f32 %v400, %v424
        %v429 = vadd.f32 %v401, %v425
        %v430 = vadd.f32 %v402, %v426
        %431 = vset.pattern.permute.xlu0 4
        %432 = vperm.xlu0 %431, %v308
        %v433 = vpop.permute.xlu0 %432
        %v435 = vlaneseq
        %v436 = vshrl.u32 %v435, 7
        %v437 = vsub.s32 0, %v436
        %v438 = vrot.slane %v311, %v437
        %v439 = vmul.f32 %v433, %v326
        %v440 = vmul.f32 %v433, %v330
        %v441 = vmul.f32 %v433, %v334
        %v442 = vmul.f32 %v433, %v338
        %v443 = vmul.f32 %v433, %v438
        %449 = vrot.lane.b32.xlu0 %v439, 127
        %v450 = vpop.permute.xlu0 %449
        %451 = vrot.lane.b32.xlu0 %v440, 127
        %v452 = vpop.permute.xlu0 %451
        %453 = vrot.lane.b32.xlu0 %v441, 127
        %v454 = vpop.permute.xlu0 %453
        %455 = vrot.lane.b32.xlu0 %v442, 127
        %v456 = vpop.permute.xlu0 %455
        %457 = vrot.lane.b32.xlu0 %v443, 127
        %v458 = vpop.permute.xlu0 %457
        %vm459 = vcmask 1039360
        %v460 = vsel %vm459, %v450, %v452
        %v461 = vsel %vm459, %v452, %v454
        %v462 = vsel %vm459, %v454, %v456
        %v463 = vsel %vm459, %v456, %v458
        %v468 = vadd.f32 %v427, %v460
        %v469 = vadd.f32 %v428, %v461
        %v470 = vadd.f32 %v429, %v462
        %v471 = vadd.f32 %v430, %v463
        %472 = vset.pattern.permute.xlu0 5
        %473 = vperm.xlu0 %472, %v308
        %v474 = vpop.permute.xlu0 %473
        %v476 = vlaneseq
        %v477 = vshrl.u32 %v476, 7
        %v478 = vsub.s32 1, %v477
        %v479 = vrot.slane %v311, %v478
        %v480 = vmul.f32 %v474, %v354
        %v481 = vmul.f32 %v474, %v358
        %v482 = vmul.f32 %v474, %v362
        %v483 = vmul.f32 %v474, %v366
        %v484 = vmul.f32 %v474, %v479
        %490 = vrot.lane.b32.xlu0 %v480, 127
        %v491 = vpop.permute.xlu0 %490
        %492 = vrot.lane.b32.xlu0 %v481, 127
        %v493 = vpop.permute.xlu0 %492
        %494 = vrot.lane.b32.xlu0 %v482, 127
        %v495 = vpop.permute.xlu0 %494
        %496 = vrot.lane.b32.xlu0 %v483, 127
        %v497 = vpop.permute.xlu0 %496
        %498 = vrot.lane.b32.xlu0 %v484, 127
        %v499 = vpop.permute.xlu0 %498
        %v500 = vsel %vm459, %v491, %v493
        %v501 = vsel %vm459, %v493, %v495
        %v502 = vsel %vm459, %v495, %v497
        %v503 = vsel %vm459, %v497, %v499
        %v508 = vadd.f32 %v468, %v500
        %v509 = vadd.f32 %v469, %v501
        %v510 = vadd.f32 %v470, %v502
        %v511 = vadd.f32 %v471, %v503
        %512 = vset.pattern.permute.xlu0 6
        %513 = vperm.xlu0 %512, %v308
        %v514 = vpop.permute.xlu0 %513
        %v516 = vlaneseq
        %v517 = vshrl.u32 %v516, 7
        %v518 = vsub.s32 2, %v517
        %v519 = vrot.slane %v311, %v518
        %v520 = vmul.f32 %v514, %v382
        %v521 = vmul.f32 %v514, %v386
        %v522 = vmul.f32 %v514, %v390
        %v523 = vmul.f32 %v514, %v394
        %v524 = vmul.f32 %v514, %v519
        %530 = vrot.lane.b32.xlu0 %v520, 127
        %v531 = vpop.permute.xlu0 %530
        %532 = vrot.lane.b32.xlu0 %v521, 127
        %v533 = vpop.permute.xlu0 %532
        %534 = vrot.lane.b32.xlu0 %v522, 127
        %v535 = vpop.permute.xlu0 %534
        %536 = vrot.lane.b32.xlu0 %v523, 127
        %v537 = vpop.permute.xlu0 %536
        %538 = vrot.lane.b32.xlu0 %v524, 127
        %v539 = vpop.permute.xlu0 %538
        %v540 = vsel %vm459, %v531, %v533
        %v541 = vsel %vm459, %v533, %v535
        %v542 = vsel %vm459, %v535, %v537
        %v543 = vsel %vm459, %v537, %v539
        %v548 = vadd.f32 %v508, %v540
        %v549 = vadd.f32 %v509, %v541
        %v550 = vadd.f32 %v510, %v542
        %v551 = vadd.f32 %v511, %v543
        %552 = vset.pattern.permute.xlu0 7
        %553 = vperm.xlu0 %552, %v308
        %v554 = vpop.permute.xlu0 %553
        %v556 = vlaneseq
        %v557 = vshrl.u32 %v556, 7
        %v558 = vsub.s32 3, %v557
        %v559 = vrot.slane %v311, %v558
        %v560 = vmul.f32 %v554, %v410
        %v561 = vmul.f32 %v554, %v414
        %v562 = vmul.f32 %v554, %v418
        %v563 = vmul.f32 %v554, %v422
        %v564 = vmul.f32 %v554, %v559
        %570 = vrot.lane.b32.xlu0 %v560, 127
        %v571 = vpop.permute.xlu0 %570
        %572 = vrot.lane.b32.xlu0 %v561, 127
        %v573 = vpop.permute.xlu0 %572
        %574 = vrot.lane.b32.xlu0 %v562, 127
        %v575 = vpop.permute.xlu0 %574
        %576 = vrot.lane.b32.xlu0 %v563, 127
        %v577 = vpop.permute.xlu0 %576
        %578 = vrot.lane.b32.xlu0 %v564, 127
        %v579 = vpop.permute.xlu0 %578
        %v580 = vsel %vm459, %v571, %v573
        %v581 = vsel %vm459, %v573, %v575
        %v582 = vsel %vm459, %v575, %v577
        %v583 = vsel %vm459, %v577, %v579
        %v588 = vadd.f32 %v548, %v580
        %v589 = vadd.f32 %v549, %v581
        %v590 = vadd.f32 %v550, %v582
        %v591 = vadd.f32 %v551, %v583
        %592 = vset.pattern.permute.xlu0 8
        %593 = vperm.xlu0 %592, %v308
        %v594 = vpop.permute.xlu0 %593
        %v596 = vmul.f32 %v594, %v326
        %v597 = vmul.f32 %v594, %v330
        %v598 = vmul.f32 %v594, %v334
        %v599 = vmul.f32 %v594, %v338
        %v600 = vmul.f32 %v594, %v438
        %606 = vrot.lane.b32.xlu0 %v596, 126
        %v607 = vpop.permute.xlu0 %606
        %608 = vrot.lane.b32.xlu0 %v597, 126
        %v609 = vpop.permute.xlu0 %608
        %610 = vrot.lane.b32.xlu0 %v598, 126
        %v611 = vpop.permute.xlu0 %610
        %612 = vrot.lane.b32.xlu0 %v599, 126
        %v613 = vpop.permute.xlu0 %612
        %614 = vrot.lane.b32.xlu0 %v600, 126
        %v615 = vpop.permute.xlu0 %614
        %vm616 = vcmask 1031168
        %v617 = vsel %vm616, %v607, %v609
        %v618 = vsel %vm616, %v609, %v611
        %v619 = vsel %vm616, %v611, %v613
        %v620 = vsel %vm616, %v613, %v615
        %v625 = vadd.f32 %v588, %v617
        %v626 = vadd.f32 %v589, %v618
        %v627 = vadd.f32 %v590, %v619
        %v628 = vadd.f32 %v591, %v620
        %629 = vset.pattern.permute.xlu0 9
        %630 = vperm.xlu0 %629, %v308
        %v631 = vpop.permute.xlu0 %630
        %v633 = vmul.f32 %v631, %v354
        %v634 = vmul.f32 %v631, %v358
        %v635 = vmul.f32 %v631, %v362
        %v636 = vmul.f32 %v631, %v366
        %v637 = vmul.f32 %v631, %v479
        %643 = vrot.lane.b32.xlu0 %v633, 126
        %v644 = vpop.permute.xlu0 %643
        %645 = vrot.lane.b32.xlu0 %v634, 126
        %v646 = vpop.permute.xlu0 %645
        %647 = vrot.lane.b32.xlu0 %v635, 126
        %v648 = vpop.permute.xlu0 %647
        %649 = vrot.lane.b32.xlu0 %v636, 126
        %v650 = vpop.permute.xlu0 %649
        %651 = vrot.lane.b32.xlu0 %v637, 126
        %v652 = vpop.permute.xlu0 %651
        %v653 = vsel %vm616, %v644, %v646
        %v654 = vsel %vm616, %v646, %v648
        %v655 = vsel %vm616, %v648, %v650
        %v656 = vsel %vm616, %v650, %v652
        %v661 = vadd.f32 %v625, %v653
        %v662 = vadd.f32 %v626, %v654
        %v663 = vadd.f32 %v627, %v655
        %v664 = vadd.f32 %v628, %v656
        %665 = vset.pattern.permute.xlu0 10
        %666 = vperm.xlu0 %665, %v308
        %v667 = vpop.permute.xlu0 %666
        %v669 = vmul.f32 %v667, %v382
        %v670 = vmul.f32 %v667, %v386
        %v671 = vmul.f32 %v667, %v390
        %v672 = vmul.f32 %v667, %v394
        %v673 = vmul.f32 %v667, %v519
        %679 = vrot.lane.b32.xlu0 %v669, 126
        %v680 = vpop.permute.xlu0 %679
        %681 = vrot.lane.b32.xlu0 %v670, 126
        %v682 = vpop.permute.xlu0 %681
        %683 = vrot.lane.b32.xlu0 %v671, 126
        %v684 = vpop.permute.xlu0 %683
        %685 = vrot.lane.b32.xlu0 %v672, 126
        %v686 = vpop.permute.xlu0 %685
        %687 = vrot.lane.b32.xlu0 %v673, 126
        %v688 = vpop.permute.xlu0 %687
        %v689 = vsel %vm616, %v680, %v682
        %v690 = vsel %vm616, %v682, %v684
        %v691 = vsel %vm616, %v684, %v686
        %v692 = vsel %vm616, %v686, %v688
        %v697 = vadd.f32 %v661, %v689
        %v698 = vadd.f32 %v662, %v690
        %v699 = vadd.f32 %v663, %v691
        %v700 = vadd.f32 %v664, %v692
        %701 = vset.pattern.permute.xlu0 11
        %702 = vperm.xlu0 %701, %v308
        %v703 = vpop.permute.xlu0 %702
        %v705 = vmul.f32 %v703, %v410
        %v706 = vmul.f32 %v703, %v414
        %v707 = vmul.f32 %v703, %v418
        %v708 = vmul.f32 %v703, %v422
        %v709 = vmul.f32 %v703, %v559
        %715 = vrot.lane.b32.xlu0 %v705, 126
        %v716 = vpop.permute.xlu0 %715
        %717 = vrot.lane.b32.xlu0 %v706, 126
        %v718 = vpop.permute.xlu0 %717
        %719 = vrot.lane.b32.xlu0 %v707, 126
        %v720 = vpop.permute.xlu0 %719
        %721 = vrot.lane.b32.xlu0 %v708, 126
        %v722 = vpop.permute.xlu0 %721
        %723 = vrot.lane.b32.xlu0 %v709, 126
        %v724 = vpop.permute.xlu0 %723
        %v725 = vsel %vm616, %v716, %v718
        %v726 = vsel %vm616, %v718, %v720
        %v727 = vsel %vm616, %v720, %v722
        %v728 = vsel %vm616, %v722, %v724
        %v733 = vadd.f32 %v697, %v725
        %v734 = vadd.f32 %v698, %v726
        %v735 = vadd.f32 %v699, %v727
        %v736 = vadd.f32 %v700, %v728
        %737 = vset.pattern.permute.xlu0 12
        %738 = vperm.xlu0 %737, %v308
        %v739 = vpop.permute.xlu0 %738
        %v741 = vmul.f32 %v739, %v326
        %v742 = vmul.f32 %v739, %v330
        %v743 = vmul.f32 %v739, %v334
        %v744 = vmul.f32 %v739, %v338
        %v745 = vmul.f32 %v739, %v438
        %751 = vrot.lane.b32.xlu0 %v741, 110
        %v752 = vpop.permute.xlu0 %751
        %753 = vrot.lane.b32.xlu0 %v742, 110
        %v754 = vpop.permute.xlu0 %753
        %755 = vrot.lane.b32.xlu0 %v743, 110
        %v756 = vpop.permute.xlu0 %755
        %757 = vrot.lane.b32.xlu0 %v744, 110
        %v758 = vpop.permute.xlu0 %757
        %759 = vrot.lane.b32.xlu0 %v745, 110
        %v760 = vpop.permute.xlu0 %759
        %vm761 = vcmask 900096
        %v762 = vsel %vm761, %v752, %v754
        %v763 = vsel %vm761, %v754, %v756
        %v764 = vsel %vm761, %v756, %v758
        %v765 = vsel %vm761, %v758, %v760
        %v770 = vadd.f32 %v733, %v762
        %v771 = vadd.f32 %v734, %v763
        %v772 = vadd.f32 %v735, %v764
        %v773 = vadd.f32 %v736, %v765
        %774 = vset.pattern.permute.xlu0 13
        %775 = vperm.xlu0 %774, %v308
        %v776 = vpop.permute.xlu0 %775
        %v778 = vmul.f32 %v776, %v354
        %v779 = vmul.f32 %v776, %v358
        %v780 = vmul.f32 %v776, %v362
        %v781 = vmul.f32 %v776, %v366
        %v782 = vmul.f32 %v776, %v479
        %788 = vrot.lane.b32.xlu0 %v778, 110
        %v789 = vpop.permute.xlu0 %788
        %790 = vrot.lane.b32.xlu0 %v779, 110
        %v791 = vpop.permute.xlu0 %790
        %792 = vrot.lane.b32.xlu0 %v780, 110
        %v793 = vpop.permute.xlu0 %792
        %794 = vrot.lane.b32.xlu0 %v781, 110
        %v795 = vpop.permute.xlu0 %794
        %796 = vrot.lane.b32.xlu0 %v782, 110
        %v797 = vpop.permute.xlu0 %796
        %v798 = vsel %vm761, %v789, %v791
        %v799 = vsel %vm761, %v791, %v793
        %v800 = vsel %vm761, %v793, %v795
        %v801 = vsel %vm761, %v795, %v797
        %v806 = vadd.f32 %v770, %v798
        %v807 = vadd.f32 %v771, %v799
        %v808 = vadd.f32 %v772, %v800
        %v809 = vadd.f32 %v773, %v801
        %810 = vset.pattern.permute.xlu0 14
        %811 = vperm.xlu0 %810, %v308
        %v812 = vpop.permute.xlu0 %811
        %v814 = vmul.f32 %v812, %v382
        %v815 = vmul.f32 %v812, %v386
        %v816 = vmul.f32 %v812, %v390
        %v817 = vmul.f32 %v812, %v394
        %v818 = vmul.f32 %v812, %v519
        %824 = vrot.lane.b32.xlu0 %v814, 110
        %v825 = vpop.permute.xlu0 %824
        %826 = vrot.lane.b32.xlu0 %v815, 110
        %v827 = vpop.permute.xlu0 %826
        %828 = vrot.lane.b32.xlu0 %v816, 110
        %v829 = vpop.permute.xlu0 %828
        %830 = vrot.lane.b32.xlu0 %v817, 110
        %v831 = vpop.permute.xlu0 %830
        %832 = vrot.lane.b32.xlu0 %v818, 110
        %v833 = vpop.permute.xlu0 %832
        %v834 = vsel %vm761, %v825, %v827
        %v835 = vsel %vm761, %v827, %v829
        %v836 = vsel %vm761, %v829, %v831
        %v837 = vsel %vm761, %v831, %v833
        %v842 = vadd.f32 %v806, %v834
        %v843 = vadd.f32 %v807, %v835
        %v844 = vadd.f32 %v808, %v836
        %v845 = vadd.f32 %v809, %v837
        %846 = vset.pattern.permute.xlu0 15
        %847 = vperm.xlu0 %846, %v308
        %v848 = vpop.permute.xlu0 %847
        %v850 = vmul.f32 %v848, %v410
        %v851 = vmul.f32 %v848, %v414
        %v852 = vmul.f32 %v848, %v418
        %v853 = vmul.f32 %v848, %v422
        %v854 = vmul.f32 %v848, %v559
        %860 = vrot.lane.b32.xlu0 %v850, 110
        %v861 = vpop.permute.xlu0 %860
        %862 = vrot.lane.b32.xlu0 %v851, 110
        %v863 = vpop.permute.xlu0 %862
        %864 = vrot.lane.b32.xlu0 %v852, 110
        %v865 = vpop.permute.xlu0 %864
        %866 = vrot.lane.b32.xlu0 %v853, 110
        %v867 = vpop.permute.xlu0 %866
        %868 = vrot.lane.b32.xlu0 %v854, 110
        %v869 = vpop.permute.xlu0 %868
        %v870 = vsel %vm761, %v861, %v863
        %v871 = vsel %vm761, %v863, %v865
        %v872 = vsel %vm761, %v865, %v867
        %v873 = vsel %vm761, %v867, %v869
        %v878 = vadd.f32 %v842, %v870
        %v879 = vadd.f32 %v843, %v871
        %v880 = vadd.f32 %v844, %v872
        %v881 = vadd.f32 %v845, %v873
        %882 = vset.pattern.permute.xlu0 16
        %883 = vperm.xlu0 %882, %v308
        %v884 = vpop.permute.xlu0 %883
        %v886 = vmul.f32 %v884, %v326
        %v887 = vmul.f32 %v884, %v330
        %v888 = vmul.f32 %v884, %v334
        %v889 = vmul.f32 %v884, %v338
        %v890 = vmul.f32 %v884, %v438
        %896 = vrot.lane.b32.xlu0 %v886, 109
        %v897 = vpop.permute.xlu0 %896
        %898 = vrot.lane.b32.xlu0 %v887, 109
        %v899 = vpop.permute.xlu0 %898
        %900 = vrot.lane.b32.xlu0 %v888, 109
        %v901 = vpop.permute.xlu0 %900
        %902 = vrot.lane.b32.xlu0 %v889, 109
        %v903 = vpop.permute.xlu0 %902
        %904 = vrot.lane.b32.xlu0 %v890, 109
        %v905 = vpop.permute.xlu0 %904
        %vm906 = vcmask 891904
        %v907 = vsel %vm906, %v897, %v899
        %v908 = vsel %vm906, %v899, %v901
        %v909 = vsel %vm906, %v901, %v903
        %v910 = vsel %vm906, %v903, %v905
        %v915 = vadd.f32 %v878, %v907
        %v916 = vadd.f32 %v879, %v908
        %v917 = vadd.f32 %v880, %v909
        %v918 = vadd.f32 %v881, %v910
        %919 = vset.pattern.permute.xlu0 17
        %920 = vperm.xlu0 %919, %v308
        %v921 = vpop.permute.xlu0 %920
        %v923 = vmul.f32 %v921, %v354
        %v924 = vmul.f32 %v921, %v358
        %v925 = vmul.f32 %v921, %v362
        %v926 = vmul.f32 %v921, %v366
        %v927 = vmul.f32 %v921, %v479
        %933 = vrot.lane.b32.xlu0 %v923, 109
        %v934 = vpop.permute.xlu0 %933
        %935 = vrot.lane.b32.xlu0 %v924, 109
        %v936 = vpop.permute.xlu0 %935
        %937 = vrot.lane.b32.xlu0 %v925, 109
        %v938 = vpop.permute.xlu0 %937
        %939 = vrot.lane.b32.xlu0 %v926, 109
        %v940 = vpop.permute.xlu0 %939
        %941 = vrot.lane.b32.xlu0 %v927, 109
        %v942 = vpop.permute.xlu0 %941
        %v943 = vsel %vm906, %v934, %v936
        %v944 = vsel %vm906, %v936, %v938
        %v945 = vsel %vm906, %v938, %v940
        %v946 = vsel %vm906, %v940, %v942
        %v951 = vadd.f32 %v915, %v943
        %v952 = vadd.f32 %v916, %v944
        %v953 = vadd.f32 %v917, %v945
        %v954 = vadd.f32 %v918, %v946
        %955 = vset.pattern.permute.xlu0 18
        %956 = vperm.xlu0 %955, %v308
        %v957 = vpop.permute.xlu0 %956
        %v959 = vmul.f32 %v957, %v382
        %v960 = vmul.f32 %v957, %v386
        %v961 = vmul.f32 %v957, %v390
        %v962 = vmul.f32 %v957, %v394
        %v963 = vmul.f32 %v957, %v519
        %969 = vrot.lane.b32.xlu0 %v959, 109
        %v970 = vpop.permute.xlu0 %969
        %971 = vrot.lane.b32.xlu0 %v960, 109
        %v972 = vpop.permute.xlu0 %971
        %973 = vrot.lane.b32.xlu0 %v961, 109
        %v974 = vpop.permute.xlu0 %973
        %975 = vrot.lane.b32.xlu0 %v962, 109
        %v976 = vpop.permute.xlu0 %975
        %977 = vrot.lane.b32.xlu0 %v963, 109
        %v978 = vpop.permute.xlu0 %977
        %v979 = vsel %vm906, %v970, %v972
        %v980 = vsel %vm906, %v972, %v974
        %v981 = vsel %vm906, %v974, %v976
        %v982 = vsel %vm906, %v976, %v978
        %v987 = vadd.f32 %v951, %v979
        %v988 = vadd.f32 %v952, %v980
        %v989 = vadd.f32 %v953, %v981
        %v990 = vadd.f32 %v954, %v982
        %991 = vset.pattern.permute.xlu0 19
        %992 = vperm.xlu0 %991, %v308
        %v993 = vpop.permute.xlu0 %992
        %v995 = vmul.f32 %v993, %v410
        %v996 = vmul.f32 %v993, %v414
        %v997 = vmul.f32 %v993, %v418
        %v998 = vmul.f32 %v993, %v422
        %v999 = vmul.f32 %v993, %v559
        %1005 = vrot.lane.b32.xlu0 %v995, 109
        %v1006 = vpop.permute.xlu0 %1005
        %1007 = vrot.lane.b32.xlu0 %v996, 109
        %v1008 = vpop.permute.xlu0 %1007
        %1009 = vrot.lane.b32.xlu0 %v997, 109
        %v1010 = vpop.permute.xlu0 %1009
        %1011 = vrot.lane.b32.xlu0 %v998, 109
        %v1012 = vpop.permute.xlu0 %1011
        %1013 = vrot.lane.b32.xlu0 %v999, 109
        %v1014 = vpop.permute.xlu0 %1013
        %v1015 = vsel %vm906, %v1006, %v1008
        %v1016 = vsel %vm906, %v1008, %v1010
        %v1017 = vsel %vm906, %v1010, %v1012
        %v1018 = vsel %vm906, %v1012, %v1014
        %v1023 = vadd.f32 %v987, %v1015
        %v1024 = vadd.f32 %v988, %v1016
        %v1025 = vadd.f32 %v989, %v1017
        %v1026 = vadd.f32 %v990, %v1018
        %1027 = vset.pattern.permute.xlu0 20
        %1028 = vperm.xlu0 %1027, %v308
        %v1029 = vpop.permute.xlu0 %1028
        %v1031 = vmul.f32 %v1029, %v326
        %v1032 = vmul.f32 %v1029, %v330
        %v1033 = vmul.f32 %v1029, %v334
        %v1034 = vmul.f32 %v1029, %v338
        %v1035 = vmul.f32 %v1029, %v438
        %1041 = vrot.lane.b32.xlu0 %v1031, 108
        %v1042 = vpop.permute.xlu0 %1041
        %1043 = vrot.lane.b32.xlu0 %v1032, 108
        %v1044 = vpop.permute.xlu0 %1043
        %1045 = vrot.lane.b32.xlu0 %v1033, 108
        %v1046 = vpop.permute.xlu0 %1045
        %1047 = vrot.lane.b32.xlu0 %v1034, 108
        %v1048 = vpop.permute.xlu0 %1047
        %1049 = vrot.lane.b32.xlu0 %v1035, 108
        %v1050 = vpop.permute.xlu0 %1049
        %vm1051 = vcmask 883712
        %v1052 = vsel %vm1051, %v1042, %v1044
        %v1053 = vsel %vm1051, %v1044, %v1046
        %v1054 = vsel %vm1051, %v1046, %v1048
        %v1055 = vsel %vm1051, %v1048, %v1050
        %v1060 = vadd.f32 %v1023, %v1052
        %v1061 = vadd.f32 %v1024, %v1053
        %v1062 = vadd.f32 %v1025, %v1054
        %v1063 = vadd.f32 %v1026, %v1055
        %1064 = vset.pattern.permute.xlu0 21
        %1065 = vperm.xlu0 %1064, %v308
        %v1066 = vpop.permute.xlu0 %1065
        %v1068 = vmul.f32 %v1066, %v354
        %v1069 = vmul.f32 %v1066, %v358
        %v1070 = vmul.f32 %v1066, %v362
        %v1071 = vmul.f32 %v1066, %v366
        %v1072 = vmul.f32 %v1066, %v479
        %1078 = vrot.lane.b32.xlu0 %v1068, 108
        %v1079 = vpop.permute.xlu0 %1078
        %1080 = vrot.lane.b32.xlu0 %v1069, 108
        %v1081 = vpop.permute.xlu0 %1080
        %1082 = vrot.lane.b32.xlu0 %v1070, 108
        %v1083 = vpop.permute.xlu0 %1082
        %1084 = vrot.lane.b32.xlu0 %v1071, 108
        %v1085 = vpop.permute.xlu0 %1084
        %1086 = vrot.lane.b32.xlu0 %v1072, 108
        %v1087 = vpop.permute.xlu0 %1086
        %v1088 = vsel %vm1051, %v1079, %v1081
        %v1089 = vsel %vm1051, %v1081, %v1083
        %v1090 = vsel %vm1051, %v1083, %v1085
        %v1091 = vsel %vm1051, %v1085, %v1087
        %v1096 = vadd.f32 %v1060, %v1088
        %v1097 = vadd.f32 %v1061, %v1089
        %v1098 = vadd.f32 %v1062, %v1090
        %v1099 = vadd.f32 %v1063, %v1091
        %1100 = vset.pattern.permute.xlu0 22
        %1101 = vperm.xlu0 %1100, %v308
        %v1102 = vpop.permute.xlu0 %1101
        %v1104 = vmul.f32 %v1102, %v382
        %v1105 = vmul.f32 %v1102, %v386
        %v1106 = vmul.f32 %v1102, %v390
        %v1107 = vmul.f32 %v1102, %v394
        %v1108 = vmul.f32 %v1102, %v519
        %1114 = vrot.lane.b32.xlu0 %v1104, 108
        %v1115 = vpop.permute.xlu0 %1114
        %1116 = vrot.lane.b32.xlu0 %v1105, 108
        %v1117 = vpop.permute.xlu0 %1116
        %1118 = vrot.lane.b32.xlu0 %v1106, 108
        %v1119 = vpop.permute.xlu0 %1118
        %1120 = vrot.lane.b32.xlu0 %v1107, 108
        %v1121 = vpop.permute.xlu0 %1120
        %1122 = vrot.lane.b32.xlu0 %v1108, 108
        %v1123 = vpop.permute.xlu0 %1122
        %v1124 = vsel %vm1051, %v1115, %v1117
        %v1125 = vsel %vm1051, %v1117, %v1119
        %v1126 = vsel %vm1051, %v1119, %v1121
        %v1127 = vsel %vm1051, %v1121, %v1123
        %v1132 = vadd.f32 %v1096, %v1124
        %v1133 = vadd.f32 %v1097, %v1125
        %v1134 = vadd.f32 %v1098, %v1126
        %v1135 = vadd.f32 %v1099, %v1127
        %1136 = vset.pattern.permute.xlu0 23
        %1137 = vperm.xlu0 %1136, %v308
        %v1138 = vpop.permute.xlu0 %1137
        %v1140 = vmul.f32 %v1138, %v410
        %v1141 = vmul.f32 %v1138, %v414
        %v1142 = vmul.f32 %v1138, %v418
        %v1143 = vmul.f32 %v1138, %v422
        %v1144 = vmul.f32 %v1138, %v559
        %1150 = vrot.lane.b32.xlu0 %v1140, 108
        %v1151 = vpop.permute.xlu0 %1150
        %1152 = vrot.lane.b32.xlu0 %v1141, 108
        %v1153 = vpop.permute.xlu0 %1152
        %1154 = vrot.lane.b32.xlu0 %v1142, 108
        %v1155 = vpop.permute.xlu0 %1154
        %1156 = vrot.lane.b32.xlu0 %v1143, 108
        %v1157 = vpop.permute.xlu0 %1156
        %1158 = vrot.lane.b32.xlu0 %v1144, 108
        %v1159 = vpop.permute.xlu0 %1158
        %v1160 = vsel %vm1051, %v1151, %v1153
        %v1161 = vsel %vm1051, %v1153, %v1155
        %v1162 = vsel %vm1051, %v1155, %v1157
        %v1163 = vsel %vm1051, %v1157, %v1159
        %v1168 = vadd.f32 %v1132, %v1160
        %v1169 = vadd.f32 %v1133, %v1161
        %v1170 = vadd.f32 %v1134, %v1162
        %v1171 = vadd.f32 %v1135, %v1163
        %1172 = vset.pattern.permute.xlu0 24
        %1173 = vperm.xlu0 %1172, %v308
        %v1174 = vpop.permute.xlu0 %1173
        %v1176 = vmul.f32 %v1174, %v326
        %v1177 = vmul.f32 %v1174, %v330
        %v1178 = vmul.f32 %v1174, %v334
        %v1179 = vmul.f32 %v1174, %v338
        %v1180 = vmul.f32 %v1174, %v438
        %1186 = vrot.lane.b32.xlu0 %v1176, 92
        %v1187 = vpop.permute.xlu0 %1186
        %1188 = vrot.lane.b32.xlu0 %v1177, 92
        %v1189 = vpop.permute.xlu0 %1188
        %1190 = vrot.lane.b32.xlu0 %v1178, 92
        %v1191 = vpop.permute.xlu0 %1190
        %1192 = vrot.lane.b32.xlu0 %v1179, 92
        %v1193 = vpop.permute.xlu0 %1192
        %1194 = vrot.lane.b32.xlu0 %v1180, 92
        %v1195 = vpop.permute.xlu0 %1194
        %vm1196 = vcmask 752640
        %v1197 = vsel %vm1196, %v1187, %v1189
        %v1198 = vsel %vm1196, %v1189, %v1191
        %v1199 = vsel %vm1196, %v1191, %v1193
        %v1200 = vsel %vm1196, %v1193, %v1195
        %v1205 = vadd.f32 %v1168, %v1197
        %v1206 = vadd.f32 %v1169, %v1198
        %v1207 = vadd.f32 %v1170, %v1199
        %v1208 = vadd.f32 %v1171, %v1200
        %1209 = vset.pattern.permute.xlu0 25
        %1210 = vperm.xlu0 %1209, %v308
        %v1211 = vpop.permute.xlu0 %1210
        %v1213 = vmul.f32 %v1211, %v354
        %v1214 = vmul.f32 %v1211, %v358
        %v1215 = vmul.f32 %v1211, %v362
        %v1216 = vmul.f32 %v1211, %v366
        %v1217 = vmul.f32 %v1211, %v479
        %1223 = vrot.lane.b32.xlu0 %v1213, 92
        %v1224 = vpop.permute.xlu0 %1223
        %1225 = vrot.lane.b32.xlu0 %v1214, 92
        %v1226 = vpop.permute.xlu0 %1225
        %1227 = vrot.lane.b32.xlu0 %v1215, 92
        %v1228 = vpop.permute.xlu0 %1227
        %1229 = vrot.lane.b32.xlu0 %v1216, 92
        %v1230 = vpop.permute.xlu0 %1229
        %1231 = vrot.lane.b32.xlu0 %v1217, 92
        %v1232 = vpop.permute.xlu0 %1231
        %v1233 = vsel %vm1196, %v1224, %v1226
        %v1234 = vsel %vm1196, %v1226, %v1228
        %v1235 = vsel %vm1196, %v1228, %v1230
        %v1236 = vsel %vm1196, %v1230, %v1232
        %v1241 = vadd.f32 %v1205, %v1233
        %v1242 = vadd.f32 %v1206, %v1234
        %v1243 = vadd.f32 %v1207, %v1235
        %v1244 = vadd.f32 %v1208, %v1236
        %1245 = vset.pattern.permute.xlu0 26
        %1246 = vperm.xlu0 %1245, %v308
        %v1247 = vpop.permute.xlu0 %1246
        %v1249 = vmul.f32 %v1247, %v382
        %v1250 = vmul.f32 %v1247, %v386
        %v1251 = vmul.f32 %v1247, %v390
        %v1252 = vmul.f32 %v1247, %v394
        %v1253 = vmul.f32 %v1247, %v519
        %1259 = vrot.lane.b32.xlu0 %v1249, 92
        %v1260 = vpop.permute.xlu0 %1259
        %1261 = vrot.lane.b32.xlu0 %v1250, 92
        %v1262 = vpop.permute.xlu0 %1261
        %1263 = vrot.lane.b32.xlu0 %v1251, 92
        %v1264 = vpop.permute.xlu0 %1263
        %1265 = vrot.lane.b32.xlu0 %v1252, 92
        %v1266 = vpop.permute.xlu0 %1265
        %1267 = vrot.lane.b32.xlu0 %v1253, 92
        %v1268 = vpop.permute.xlu0 %1267
        %v1269 = vsel %vm1196, %v1260, %v1262
        %v1270 = vsel %vm1196, %v1262, %v1264
        %v1271 = vsel %vm1196, %v1264, %v1266
        %v1272 = vsel %vm1196, %v1266, %v1268
        %v1277 = vadd.f32 %v1241, %v1269
        %v1278 = vadd.f32 %v1242, %v1270
        %v1279 = vadd.f32 %v1243, %v1271
        %v1280 = vadd.f32 %v1244, %v1272
        %1281 = vset.pattern.permute.xlu0 27
        %1282 = vperm.xlu0 %1281, %v308
        %v1283 = vpop.permute.xlu0 %1282
        %v1285 = vmul.f32 %v1283, %v410
        %v1286 = vmul.f32 %v1283, %v414
        %v1287 = vmul.f32 %v1283, %v418
        %v1288 = vmul.f32 %v1283, %v422
        %v1289 = vmul.f32 %v1283, %v559
        %1295 = vrot.lane.b32.xlu0 %v1285, 92
        %v1296 = vpop.permute.xlu0 %1295
        %1297 = vrot.lane.b32.xlu0 %v1286, 92
        %v1298 = vpop.permute.xlu0 %1297
        %1299 = vrot.lane.b32.xlu0 %v1287, 92
        %v1300 = vpop.permute.xlu0 %1299
        %1301 = vrot.lane.b32.xlu0 %v1288, 92
        %v1302 = vpop.permute.xlu0 %1301
        %1303 = vrot.lane.b32.xlu0 %v1289, 92
        %v1304 = vpop.permute.xlu0 %1303
        %v1305 = vsel %vm1196, %v1296, %v1298
        %v1306 = vsel %vm1196, %v1298, %v1300
        %v1307 = vsel %vm1196, %v1300, %v1302
        %v1308 = vsel %vm1196, %v1302, %v1304
        %v1313 = vadd.f32 %v1277, %v1305
        %v1314 = vadd.f32 %v1278, %v1306
        %v1315 = vadd.f32 %v1279, %v1307
        %v1316 = vadd.f32 %v1280, %v1308
        %1317 = vset.pattern.permute.xlu0 28
        %1318 = vperm.xlu0 %1317, %v308
        %v1319 = vpop.permute.xlu0 %1318
        %v1321 = vmul.f32 %v1319, %v326
        %v1322 = vmul.f32 %v1319, %v330
        %v1323 = vmul.f32 %v1319, %v334
        %v1324 = vmul.f32 %v1319, %v338
        %v1325 = vmul.f32 %v1319, %v438
        %1331 = vrot.lane.b32.xlu0 %v1321, 91
        %v1332 = vpop.permute.xlu0 %1331
        %1333 = vrot.lane.b32.xlu0 %v1322, 91
        %v1334 = vpop.permute.xlu0 %1333
        %1335 = vrot.lane.b32.xlu0 %v1323, 91
        %v1336 = vpop.permute.xlu0 %1335
        %1337 = vrot.lane.b32.xlu0 %v1324, 91
        %v1338 = vpop.permute.xlu0 %1337
        %1339 = vrot.lane.b32.xlu0 %v1325, 91
        %v1340 = vpop.permute.xlu0 %1339
        %vm1341 = vcmask 744448
        %v1342 = vsel %vm1341, %v1332, %v1334
        %v1343 = vsel %vm1341, %v1334, %v1336
        %v1344 = vsel %vm1341, %v1336, %v1338
        %v1345 = vsel %vm1341, %v1338, %v1340
        %v1350 = vadd.f32 %v1313, %v1342
        %v1351 = vadd.f32 %v1314, %v1343
        %v1352 = vadd.f32 %v1315, %v1344
        %v1353 = vadd.f32 %v1316, %v1345
        %1354 = vset.pattern.permute.xlu0 29
        %1355 = vperm.xlu0 %1354, %v308
        %v1356 = vpop.permute.xlu0 %1355
        %v1358 = vmul.f32 %v1356, %v354
        %v1359 = vmul.f32 %v1356, %v358
        %v1360 = vmul.f32 %v1356, %v362
        %v1361 = vmul.f32 %v1356, %v366
        %v1362 = vmul.f32 %v1356, %v479
        %1368 = vrot.lane.b32.xlu0 %v1358, 91
        %v1369 = vpop.permute.xlu0 %1368
        %1370 = vrot.lane.b32.xlu0 %v1359, 91
        %v1371 = vpop.permute.xlu0 %1370
        %1372 = vrot.lane.b32.xlu0 %v1360, 91
        %v1373 = vpop.permute.xlu0 %1372
        %1374 = vrot.lane.b32.xlu0 %v1361, 91
        %v1375 = vpop.permute.xlu0 %1374
        %1376 = vrot.lane.b32.xlu0 %v1362, 91
        %v1377 = vpop.permute.xlu0 %1376
        %v1378 = vsel %vm1341, %v1369, %v1371
        %v1379 = vsel %vm1341, %v1371, %v1373
        %v1380 = vsel %vm1341, %v1373, %v1375
        %v1381 = vsel %vm1341, %v1375, %v1377
        %v1386 = vadd.f32 %v1350, %v1378
        %v1387 = vadd.f32 %v1351, %v1379
        %v1388 = vadd.f32 %v1352, %v1380
        %v1389 = vadd.f32 %v1353, %v1381
        %1390 = vset.pattern.permute.xlu0 30
        %1391 = vperm.xlu0 %1390, %v308
        %v1392 = vpop.permute.xlu0 %1391
        %v1394 = vmul.f32 %v1392, %v382
        %v1395 = vmul.f32 %v1392, %v386
        %v1396 = vmul.f32 %v1392, %v390
        %v1397 = vmul.f32 %v1392, %v394
        %v1398 = vmul.f32 %v1392, %v519
        %1404 = vrot.lane.b32.xlu0 %v1394, 91
        %v1405 = vpop.permute.xlu0 %1404
        %1406 = vrot.lane.b32.xlu0 %v1395, 91
        %v1407 = vpop.permute.xlu0 %1406
        %1408 = vrot.lane.b32.xlu0 %v1396, 91
        %v1409 = vpop.permute.xlu0 %1408
        %1410 = vrot.lane.b32.xlu0 %v1397, 91
        %v1411 = vpop.permute.xlu0 %1410
        %1412 = vrot.lane.b32.xlu0 %v1398, 91
        %v1413 = vpop.permute.xlu0 %1412
        %v1414 = vsel %vm1341, %v1405, %v1407
        %v1415 = vsel %vm1341, %v1407, %v1409
        %v1416 = vsel %vm1341, %v1409, %v1411
        %v1417 = vsel %vm1341, %v1411, %v1413
        %v1422 = vadd.f32 %v1386, %v1414
        %v1423 = vadd.f32 %v1387, %v1415
        %v1424 = vadd.f32 %v1388, %v1416
        %v1425 = vadd.f32 %v1389, %v1417
        %1426 = vset.pattern.permute.xlu0 31
        %1427 = vperm.xlu0 %1426, %v308
        %v1428 = vpop.permute.xlu0 %1427
        %v1430 = vmul.f32 %v1428, %v410
        %v1431 = vmul.f32 %v1428, %v414
        %v1432 = vmul.f32 %v1428, %v418
        %v1433 = vmul.f32 %v1428, %v422
        %v1434 = vmul.f32 %v1428, %v559
        %1440 = vrot.lane.b32.xlu0 %v1430, 91
        %v1441 = vpop.permute.xlu0 %1440
        %1442 = vrot.lane.b32.xlu0 %v1431, 91
        %v1443 = vpop.permute.xlu0 %1442
        %1444 = vrot.lane.b32.xlu0 %v1432, 91
        %v1445 = vpop.permute.xlu0 %1444
        %1446 = vrot.lane.b32.xlu0 %v1433, 91
        %v1447 = vpop.permute.xlu0 %1446
        %1448 = vrot.lane.b32.xlu0 %v1434, 91
        %v1449 = vpop.permute.xlu0 %1448
        %v1450 = vsel %vm1341, %v1441, %v1443
        %v1451 = vsel %vm1341, %v1443, %v1445
        %v1452 = vsel %vm1341, %v1445, %v1447
        %v1453 = vsel %vm1341, %v1447, %v1449
        %v1458 = vadd.f32 %v1422, %v1450
        %v1459 = vadd.f32 %v1423, %v1451
        %v1460 = vadd.f32 %v1424, %v1452
        %v1461 = vadd.f32 %v1425, %v1453
        %1462 = vset.pattern.permute.xlu0 32
        %1463 = vperm.xlu0 %1462, %v308
        %v1464 = vpop.permute.xlu0 %1463
        %v1466 = vmul.f32 %v1464, %v326
        %v1467 = vmul.f32 %v1464, %v330
        %v1468 = vmul.f32 %v1464, %v334
        %v1469 = vmul.f32 %v1464, %v338
        %v1470 = vmul.f32 %v1464, %v438
        %1476 = vrot.lane.b32.xlu0 %v1466, 90
        %v1477 = vpop.permute.xlu0 %1476
        %1478 = vrot.lane.b32.xlu0 %v1467, 90
        %v1479 = vpop.permute.xlu0 %1478
        %1480 = vrot.lane.b32.xlu0 %v1468, 90
        %v1481 = vpop.permute.xlu0 %1480
        %1482 = vrot.lane.b32.xlu0 %v1469, 90
        %v1483 = vpop.permute.xlu0 %1482
        %1484 = vrot.lane.b32.xlu0 %v1470, 90
        %v1485 = vpop.permute.xlu0 %1484
        %vm1486 = vcmask 736256
        %v1487 = vsel %vm1486, %v1477, %v1479
        %v1488 = vsel %vm1486, %v1479, %v1481
        %v1489 = vsel %vm1486, %v1481, %v1483
        %v1490 = vsel %vm1486, %v1483, %v1485
        %v1495 = vadd.f32 %v1458, %v1487
        %v1496 = vadd.f32 %v1459, %v1488
        %v1497 = vadd.f32 %v1460, %v1489
        %v1498 = vadd.f32 %v1461, %v1490
        %1499 = vset.pattern.permute.xlu0 33
        %1500 = vperm.xlu0 %1499, %v308
        %v1501 = vpop.permute.xlu0 %1500
        %v1503 = vmul.f32 %v1501, %v354
        %v1504 = vmul.f32 %v1501, %v358
        %v1505 = vmul.f32 %v1501, %v362
        %v1506 = vmul.f32 %v1501, %v366
        %v1507 = vmul.f32 %v1501, %v479
        %1513 = vrot.lane.b32.xlu0 %v1503, 90
        %v1514 = vpop.permute.xlu0 %1513
        %1515 = vrot.lane.b32.xlu0 %v1504, 90
        %v1516 = vpop.permute.xlu0 %1515
        %1517 = vrot.lane.b32.xlu0 %v1505, 90
        %v1518 = vpop.permute.xlu0 %1517
        %1519 = vrot.lane.b32.xlu0 %v1506, 90
        %v1520 = vpop.permute.xlu0 %1519
        %1521 = vrot.lane.b32.xlu0 %v1507, 90
        %v1522 = vpop.permute.xlu0 %1521
        %v1523 = vsel %vm1486, %v1514, %v1516
        %v1524 = vsel %vm1486, %v1516, %v1518
        %v1525 = vsel %vm1486, %v1518, %v1520
        %v1526 = vsel %vm1486, %v1520, %v1522
        %v1531 = vadd.f32 %v1495, %v1523
        %v1532 = vadd.f32 %v1496, %v1524
        %v1533 = vadd.f32 %v1497, %v1525
        %v1534 = vadd.f32 %v1498, %v1526
        %1535 = vset.pattern.permute.xlu0 34
        %1536 = vperm.xlu0 %1535, %v308
        %v1537 = vpop.permute.xlu0 %1536
        %v1539 = vmul.f32 %v1537, %v382
        %v1540 = vmul.f32 %v1537, %v386
        %v1541 = vmul.f32 %v1537, %v390
        %v1542 = vmul.f32 %v1537, %v394
        %v1543 = vmul.f32 %v1537, %v519
        %1549 = vrot.lane.b32.xlu0 %v1539, 90
        %v1550 = vpop.permute.xlu0 %1549
        %1551 = vrot.lane.b32.xlu0 %v1540, 90
        %v1552 = vpop.permute.xlu0 %1551
        %1553 = vrot.lane.b32.xlu0 %v1541, 90
        %v1554 = vpop.permute.xlu0 %1553
        %1555 = vrot.lane.b32.xlu0 %v1542, 90
        %v1556 = vpop.permute.xlu0 %1555
        %1557 = vrot.lane.b32.xlu0 %v1543, 90
        %v1558 = vpop.permute.xlu0 %1557
        %v1559 = vsel %vm1486, %v1550, %v1552
        %v1560 = vsel %vm1486, %v1552, %v1554
        %v1561 = vsel %vm1486, %v1554, %v1556
        %v1562 = vsel %vm1486, %v1556, %v1558
        %v1567 = vadd.f32 %v1531, %v1559
        %v1568 = vadd.f32 %v1532, %v1560
        %v1569 = vadd.f32 %v1533, %v1561
        %v1570 = vadd.f32 %v1534, %v1562
        %1571 = vset.pattern.permute.xlu0 35
        %1572 = vperm.xlu0 %1571, %v308
        %v1573 = vpop.permute.xlu0 %1572
        %v1575 = vmul.f32 %v1573, %v410
        %v1576 = vmul.f32 %v1573, %v414
        %v1577 = vmul.f32 %v1573, %v418
        %v1578 = vmul.f32 %v1573, %v422
        %v1579 = vmul.f32 %v1573, %v559
        %1585 = vrot.lane.b32.xlu0 %v1575, 90
        %v1586 = vpop.permute.xlu0 %1585
        %1587 = vrot.lane.b32.xlu0 %v1576, 90
        %v1588 = vpop.permute.xlu0 %1587
        %1589 = vrot.lane.b32.xlu0 %v1577, 90
        %v1590 = vpop.permute.xlu0 %1589
        %1591 = vrot.lane.b32.xlu0 %v1578, 90
        %v1592 = vpop.permute.xlu0 %1591
        %1593 = vrot.lane.b32.xlu0 %v1579, 90
        %v1594 = vpop.permute.xlu0 %1593
        %v1595 = vsel %vm1486, %v1586, %v1588
        %v1596 = vsel %vm1486, %v1588, %v1590
        %v1597 = vsel %vm1486, %v1590, %v1592
        %v1598 = vsel %vm1486, %v1592, %v1594
        %v1603 = vadd.f32 %v1567, %v1595
        %v1604 = vadd.f32 %v1568, %v1596
        %v1605 = vadd.f32 %v1569, %v1597
        %v1606 = vadd.f32 %v1570, %v1598
        %v1607 = vld [vmem:[%s299] sm:$0xf]
        %v1609 = vlaneseq
        %v1610 = vshrl.u32 %v1609, 7
        %v1611 = vsub.s32 0, %v1610
        %v1612 = vrot.slane %v1607, %v1611
        %v1613 = vlaneseq
        %v1614 = vshrl.u32 %v1613, 7
        %v1615 = vsub.s32 1, %v1614
        %v1616 = vrot.slane %v1607, %v1615
        %v1617 = vlaneseq
        %v1618 = vshrl.u32 %v1617, 7
        %v1619 = vsub.s32 2, %v1618
        %v1620 = vrot.slane %v1607, %v1619
        %v1621 = vlaneseq
        %v1622 = vshrl.u32 %v1621, 7
        %v1623 = vsub.s32 3, %v1622
        %v1624 = vrot.slane %v1607, %v1623
        %v1629 = vmul.f32 %v1603, %v1612
        %v1630 = vmul.f32 %v1604, %v1616
        %v1631 = vmul.f32 %v1605, %v1620
        %v1632 = vmul.f32 %v1606, %v1624
        %v1633 = vld [vmem:[%s4] sm:$0xff]
        %v1634 = vadd.f32 %v1629, %v1630
        %v1635 = vadd.f32 %v1634, %v1631
        %v1636 = vadd.f32 %v1635, %v1632
        %1637 = vadd.xlane.f32.xlu0 %v1636
        %v1638 = vpop.xlane.xlu0 %1637
        %v1639 = vadd.f32 %v1633, %v1638
        %vm1640 = vcmask 7168
        %1641 = vst.msk [vmem:[%s4] sm:$0xff] %vm1640, %v1639
        %v1642 = vld [vmem:[%s5] sm:$0xff]
        %v1643 = vmul.f32 %v1629, %v1603
        %v1644 = vmul.f32 %v1630, %v1604
        %v1645 = vmul.f32 %v1631, %v1605
        %v1646 = vmul.f32 %v1632, %v1606
        %v1647 = vadd.f32 %v1643, %v1644
        %v1648 = vadd.f32 %v1647, %v1645
        %v1649 = vadd.f32 %v1648, %v1646
        %1650 = vadd.xlane.f32.xlu0 %v1649
        %v1651 = vpop.xlane.xlu0 %1650
        %v1652 = vadd.f32 %v1642, %v1651
        %1653 = vst.msk [vmem:[%s5] sm:$0xff] %vm1640, %v1652
        // Predicated region
        $region53: #{tpu_custom_call.1} parent=35 // pred_check
          %p1654 = pneg %p137
        $region54: #{tpu_custom_call.1} parent=35 // pred_check_branch
          %1656 = sbr.rel (%p1654) target = $region56
        $region55: #{tpu_custom_call.1} parent=35 // pred_region
          _
        $region56: #{tpu_custom_call.1} parent=35 // pred_fallthru
          _
        // Predicated region
        $region57: #{tpu_custom_call.1} parent=35 // pred_check
          %p1657 = pneg %p158
        $region58: #{tpu_custom_call.1} parent=35 // pred_check_branch
          %1659 = sbr.rel (%p1657) target = $region60
        $region59: #{tpu_custom_call.1} parent=35 // pred_region
          _
        $region60: #{tpu_custom_call.1} parent=35 // pred_fallthru
          _
        // Predicated region
        $region61: #{tpu_custom_call.1} parent=35 // pred_check
          %p1660 = pneg %p137
        $region62: #{tpu_custom_call.1} parent=35 // pred_check_branch
          %1662 = sbr.rel (%p1660) target = $region64
        $region63: #{tpu_custom_call.1} parent=35 // pred_region
          _
        $region64: #{tpu_custom_call.1} parent=35 // pred_fallthru
          _
        // Predicated region
        $region65: #{tpu_custom_call.1} parent=35 // pred_check
          %p1663 = pneg %p158
        $region66: #{tpu_custom_call.1} parent=35 // pred_check_branch
          %1665 = sbr.rel (%p1663) target = $region68
        $region67: #{tpu_custom_call.1} parent=35 // pred_region
          _
        $region68: #{tpu_custom_call.1} parent=35 // pred_fallthru
          _
      $region36: #{tpu_custom_call.1} parent=5 // pred_fallthru
        _
      %p1666 = scmp.le.s32.totalorder 2, %s16
      // Predicated region
      $region69: #{tpu_custom_call.1} parent=5 // pred_check
        %p1667 = pneg %p1666
      $region70: #{tpu_custom_call.1} parent=5 // pred_check_branch
        %1669 = sbr.rel (%p1667) target = $region72
      $region71: #{tpu_custom_call.1} parent=5 // pred_region
        %s1670 = ssub.s32 %s16, 2
      $region72: #{tpu_custom_call.1} parent=5 // pred_fallthru
        _
    $region6: #{tpu_custom_call.1} parent=1 // loop_footer
      %s20 = sadd.s32 1, %s16
    $region7: #{tpu_custom_call.1} parent=1 // loop_footer_branch
      %15 = sbr.rel target = $region3
    $region8: #{tpu_custom_call.1} parent=1 // loop_exit
      _
    %1671 = vsyncpa [#allocation3], 1
    %s1672 = scalar_lea.sflag [#allocation3], 1
    %1673 = vsyncpa %s1672, 1
    %1674 = vsyncpa [#allocation5], 1
    %s1675 = scalar_lea.sflag [#allocation5], 1
    %1676 = vsyncpa %s1675, 1

</llo_original>
